<compile_context>
chip_gen: v5e
topology: v5e:2x2
jax: 0.10.0
libtpu: 0.0.40
codegen_flags: <defaults>
</compile_context>

<pallas_src>
import numpy as np
import jax
import jax.numpy as jnp
from jax.experimental import pallas as pl
from jax.experimental.pallas import tpu as pltpu


def _lsr_mlp_kernel(x_ref, w0_ref, b0_ref, w1_ref, b1_ref, w2_ref, b2_ref,
                    w3_ref, b3_ref, out_ref):
    """One batch tile: 4 MXU matmuls with f32 accumulation + f32 bias/ReLU."""
    x = x_ref[...].astype(w0_ref.dtype)   # cast hidden under the pipeline

    h = jnp.dot(x, w0_ref[...], preferred_element_type=jnp.float32) + b0_ref[...]
    h = jnp.maximum(h, 0.0).astype(w1_ref.dtype)

    h = jnp.dot(h, w1_ref[...], preferred_element_type=jnp.float32) + b1_ref[...]
    h = jnp.maximum(h, 0.0).astype(w2_ref.dtype)

    h = jnp.dot(h, w2_ref[...], preferred_element_type=jnp.float32) + b2_ref[...]
    h = jnp.maximum(h, 0.0).astype(w3_ref.dtype)

    out = jnp.dot(h, w3_ref[...], preferred_element_type=jnp.float32) + b3_ref[...]
    out_ref[...] = out.astype(out_ref.dtype)


def _fold_last_layer(w3, b3, last_layer, n_bases, n_targets):
    """Fold sum_k out_rs[:,k,:]*last_layer[k] into the final linear layer.

    sel[k*T + t', t] = last_layer[k] * (t' == t), so
      (x @ w3 + b3) @ sel == sum over bases of the reshaped output * last_layer.
    """
    eye = jnp.eye(n_targets, dtype=jnp.float32)
    sel = (last_layer.astype(jnp.float32)[:, None, None] * eye[None]
           ).reshape(n_bases * n_targets, n_targets)
    w3_eff = w3.astype(jnp.float32) @ sel
    b3_eff = b3.astype(jnp.float32) @ sel
    return w3_eff, b3_eff


def prepare_lsr_params(params, n_bases, n_targets, compute_dtype=jnp.bfloat16):
    """One-time param preparation (do this OUTSIDE the per-step forward path).

    Folds the bases reduction into the last layer and casts matmul operands to
    `compute_dtype` (bf16 by default — native MXU dtype on v5e/v6e/v7x).
    Biases stay f32 (elementwise work happens on the f32 accumulator).
    """
    (w0, b0), (w1, b1), (w2, b2), (w3, b3) = params["layers"]
    last_layer = params["last_layer"]
    compute_dtype = jnp.dtype(compute_dtype)

    w3_eff, b3_eff = _fold_last_layer(w3, b3, last_layer, n_bases, n_targets)

    weights = tuple(jnp.asarray(w, dtype=compute_dtype)
                    for w in (w0, w1, w2, w3_eff))
    biases = tuple(jnp.asarray(b, dtype=jnp.float32)
                   for b in (b0, b1, b2, b3_eff))
    return {"weights": weights, "biases": biases, "n_targets": n_targets}


def _round_up(v, m):
    return ((v + m - 1) // m) * m


def _pick_batch_tile(batch, block_batch):
    """Batch tile: multiple of 8 (or the full batch), >=2 grid steps when
    possible (so v7x's two TensorCores both get work), capped at block_batch."""
    block_batch = max(8, _round_up(int(block_batch), 8))
    if batch <= 8:
        return batch                       # full-dim block (valid per (8,128) rule)
    return min(block_batch, _round_up(pl.cdiv(batch, 2), 8))


def lsr_basis_net_forward(x, prepared, *, block_batch=512):
    """Forward pass. `prepared` comes from prepare_lsr_params (call it once)."""
    w0, w1, w2, w3 = prepared["weights"]
    b0, b1, b2, b3 = prepared["biases"]

    batch, in_size = x.shape
    h0, h1, h2 = w0.shape[1], w1.shape[1], w2.shape[1]
    n_targets = w3.shape[1]

    tb = _pick_batch_tile(batch, block_batch)
    assert tb == batch or tb % 8 == 0, "batch tile must be a multiple of 8"
    n_blocks = pl.cdiv(batch, tb)
    # NOTE: a partial final tile carries padded garbage rows through the
    # matmuls; harmless because every row is independent (no cross-row reduce).

    x_spec = pl.BlockSpec((tb, in_size), lambda i: (i, 0))
    out_spec = pl.BlockSpec((tb, n_targets), lambda i: (i, 0))

    def resident(shape):
        # Constant block index + single buffer: DMA'd once, stays resident in
        # VMEM across every batch grid step.
        return pl.BlockSpec(shape, lambda i: (0, 0),
                            pipeline_mode=pl.Buffered(1))

    in_specs = [
        x_spec,
        resident((in_size, h0)), resident((1, h0)),
        resident((h0, h1)), resident((1, h1)),
        resident((h1, h2)), resident((1, h2)),
        resident((h2, n_targets)), resident((1, n_targets)),
    ]

    operands = (x, w0, b0, w1, b1, w2, b2, w3, b3)
    flops = 2 * batch * (in_size * h0 + h0 * h1 + h1 * h2 + h2 * n_targets)
    bytes_accessed = (sum(int(a.size) * a.dtype.itemsize for a in operands)
                      + batch * n_targets * 4)

    return pl.pallas_call(
        _lsr_mlp_kernel,
        out_shape=jax.ShapeDtypeStruct((batch, n_targets), jnp.float32),
        grid=(n_blocks,),
        in_specs=in_specs,
        out_specs=out_spec,
        compiler_params=pltpu.CompilerParams(
            dimension_semantics=("parallel",)),
        cost_estimate=pl.CostEstimate(
            flops=flops, transcendentals=0, bytes_accessed=bytes_accessed),
    )(*operands)


def reference_forward(x, params, n_bases, n_targets):
    """Pure-JAX reference matching the PyTorch forward (unfolded, f32)."""
    (w0, b0), (w1, b1), (w2, b2), (w3, b3) = params["layers"]
    h = jnp.maximum(x @ w0 + b0, 0.0)
    h = jnp.maximum(h @ w1 + b1, 0.0)
    h = jnp.maximum(h @ w2 + b2, 0.0)
    out_flat = h @ w3 + b3
    out_rs = out_flat.reshape(x.shape[0], n_bases, n_targets)
    return jnp.sum(out_rs * params["last_layer"][None, :, None], axis=-2)


def init_params(key, in_size, layer_sizes, n_bases, n_targets):
    """PyTorch nn.Linear default init (uniform +/- 1/sqrt(fan_in)).

    last_layer is zeros in the PyTorch __init__; drawn randomly here so the
    kernel output is non-trivial for testing.
    """
    dims = [in_size] + list(layer_sizes) + [n_bases * n_targets]
    layers = []
    for i in range(len(dims) - 1):
        fan_in, fan_out = dims[i], dims[i + 1]
        key, kw, kb = jax.random.split(key, 3)
        bound = 1.0 / np.sqrt(fan_in)
        w = jax.random.uniform(kw, (fan_in, fan_out), jnp.float32, -bound, bound)
        b = jax.random.uniform(kb, (1, fan_out), jnp.float32, -bound, bound)
        layers.append((w, b))
    key, kll = jax.random.split(key)
    last_layer = jax.random.normal(kll, (n_bases,), jnp.float32)
    # TODO(synk): last_layer_prior / *_cov_sqrt / Q_sqrt / R_sqrt /
    # regularization_prior are unused in forward(); not materialized here.
    return {"layers": layers, "last_layer": last_layer}


if __name__ == "__main__":
    IN_SIZE = 16
    LAYER_SIZES = [256, 256, 256]   # module default (already lane-aligned)
    N_BASES = 4
    N_TARGETS = 3
    BATCH = 300                      # exercises a 2-step grid + partial tile

    key = jax.random.PRNGKey(0)
    key, kx = jax.random.split(key)
    x = jax.random.normal(kx, (BATCH, IN_SIZE), jnp.float32)
    params = init_params(key, IN_SIZE, LAYER_SIZES, N_BASES, N_TARGETS)

    ref = jax.block_until_ready(reference_forward(x, params, N_BASES, N_TARGETS))

    # f32 compute path: tight correctness check (folding only reassociates).
    prepared_f32 = prepare_lsr_params(params, N_BASES, N_TARGETS,
                                      compute_dtype=jnp.float32)
    out_f32 = jax.block_until_ready(lsr_basis_net_forward(x, prepared_f32))
    np.testing.assert_allclose(np.asarray(out_f32), np.asarray(ref),
                               rtol=1e-4, atol=1e-4)

    # Default bf16-matmul path (MXU-native on v5e/v6e/v7x, f32 accumulation).
    prepared_bf16 = prepare_lsr_params(params, N_BASES, N_TARGETS)
    out_bf16 = jax.block_until_ready(lsr_basis_net_forward(x, prepared_bf16))
    np.testing.assert_allclose(np.asarray(out_bf16), np.asarray(ref),
                               rtol=1e-1, atol=1e-1)

    print("KERNEL_OK")
</pallas_src>

<mosaic_0001>
module attributes {stable_mosaic.version = 11 : i64} {
  func.func @_lsr_mlp_kernel(%arg0: i32, %arg1: memref<152x16xf32, #tpu.memory_space<vmem>>, %arg2: memref<16x256xf32, #tpu.memory_space<vmem>>, %arg3: memref<1x256xf32, #tpu.memory_space<vmem>>, %arg4: memref<256x256xf32, #tpu.memory_space<vmem>>, %arg5: memref<1x256xf32, #tpu.memory_space<vmem>>, %arg6: memref<256x256xf32, #tpu.memory_space<vmem>>, %arg7: memref<1x256xf32, #tpu.memory_space<vmem>>, %arg8: memref<256x3xf32, #tpu.memory_space<vmem>>, %arg9: memref<1x3xf32, #tpu.memory_space<vmem>>, %arg10: memref<152x3xf32, #tpu.memory_space<vmem>>) attributes {dimension_semantics = [#tpu.dimension_semantics<parallel>], iteration_bounds = array<i64: 2>, scalar_prefetch = 0 : i64, scratch_operands = 0 : i64, tpu.core_type = #tpu.core_type<tc>, window_params = [{transform_indices = @transform_0, window_bounds = array<i64: 152, 16>}, {pipeline_mode = #tpu.pipeline_mode<synchronous>, transform_indices = @transform_1, window_bounds = array<i64: 16, 256>}, {pipeline_mode = #tpu.pipeline_mode<synchronous>, transform_indices = @transform_2, window_bounds = array<i64: 1, 256>}, {pipeline_mode = #tpu.pipeline_mode<synchronous>, transform_indices = @transform_3, window_bounds = array<i64: 256, 256>}, {pipeline_mode = #tpu.pipeline_mode<synchronous>, transform_indices = @transform_4, window_bounds = array<i64: 1, 256>}, {pipeline_mode = #tpu.pipeline_mode<synchronous>, transform_indices = @transform_5, window_bounds = array<i64: 256, 256>}, {pipeline_mode = #tpu.pipeline_mode<synchronous>, transform_indices = @transform_6, window_bounds = array<i64: 1, 256>}, {pipeline_mode = #tpu.pipeline_mode<synchronous>, transform_indices = @transform_7, window_bounds = array<i64: 256, 3>}, {pipeline_mode = #tpu.pipeline_mode<synchronous>, transform_indices = @transform_8, window_bounds = array<i64: 1, 3>}, {transform_indices = @transform_9, window_bounds = array<i64: 152, 3>}]} {
    %c0 = arith.constant 0 : index
    %c0_0 = arith.constant 0 : index
    %0 = vector.load %arg1[%c0, %c0_0] : memref<152x16xf32, #tpu.memory_space<vmem>>, vector<152x16xf32>
    %c0_1 = arith.constant 0 : index
    %c0_2 = arith.constant 0 : index
    %1 = vector.load %arg2[%c0_1, %c0_2] : memref<16x256xf32, #tpu.memory_space<vmem>>, vector<16x256xf32>
    %cst = arith.constant dense<0.000000e+00> : vector<152x256xf32>
    %2 = tpu.matmul %0, %1, %cst {dimension_numbers = #tpu.dot_dimension_numbers<[1], [0], [0], [1], [0, 0, 1, 1], [], []>} : vector<152x16xf32>, vector<16x256xf32>, vector<152x256xf32> -> vector<152x256xf32>
    %c0_3 = arith.constant 0 : index
    %c0_4 = arith.constant 0 : index
    %3 = vector.load %arg3[%c0_3, %c0_4] : memref<1x256xf32, #tpu.memory_space<vmem>>, vector<1x256xf32>
    %4 = vector.broadcast %3 : vector<1x256xf32> to vector<152x256xf32>
    %5 = arith.addf %2, %4 : vector<152x256xf32>
    %cst_5 = arith.constant 0.000000e+00 : f32
    %6 = vector.broadcast %cst_5 : f32 to vector<152x256xf32>
    %7 = arith.maximumf %5, %6 : vector<152x256xf32>
    %c0_6 = arith.constant 0 : index
    %c0_7 = arith.constant 0 : index
    %8 = vector.load %arg4[%c0_6, %c0_7] : memref<256x256xf32, #tpu.memory_space<vmem>>, vector<256x256xf32>
    %cst_8 = arith.constant dense<0.000000e+00> : vector<152x256xf32>
    %9 = tpu.matmul %7, %8, %cst_8 {dimension_numbers = #tpu.dot_dimension_numbers<[1], [0], [0], [1], [0, 0, 1, 1], [], []>} : vector<152x256xf32>, vector<256x256xf32>, vector<152x256xf32> -> vector<152x256xf32>
    %c0_9 = arith.constant 0 : index
    %c0_10 = arith.constant 0 : index
    %10 = vector.load %arg5[%c0_9, %c0_10] : memref<1x256xf32, #tpu.memory_space<vmem>>, vector<1x256xf32>
    %11 = vector.broadcast %10 : vector<1x256xf32> to vector<152x256xf32>
    %12 = arith.addf %9, %11 : vector<152x256xf32>
    %cst_11 = arith.constant 0.000000e+00 : f32
    %13 = vector.broadcast %cst_11 : f32 to vector<152x256xf32>
    %14 = arith.maximumf %12, %13 : vector<152x256xf32>
    %c0_12 = arith.constant 0 : index
    %c0_13 = arith.constant 0 : index
    %15 = vector.load %arg6[%c0_12, %c0_13] : memref<256x256xf32, #tpu.memory_space<vmem>>, vector<256x256xf32>
    %cst_14 = arith.constant dense<0.000000e+00> : vector<152x256xf32>
    %16 = tpu.matmul %14, %15, %cst_14 {dimension_numbers = #tpu.dot_dimension_numbers<[1], [0], [0], [1], [0, 0, 1, 1], [], []>} : vector<152x256xf32>, vector<256x256xf32>, vector<152x256xf32> -> vector<152x256xf32>
    %c0_15 = arith.constant 0 : index
    %c0_16 = arith.constant 0 : index
    %17 = vector.load %arg7[%c0_15, %c0_16] : memref<1x256xf32, #tpu.memory_space<vmem>>, vector<1x256xf32>
    %18 = vector.broadcast %17 : vector<1x256xf32> to vector<152x256xf32>
    %19 = arith.addf %16, %18 : vector<152x256xf32>
    %cst_17 = arith.constant 0.000000e+00 : f32
    %20 = vector.broadcast %cst_17 : f32 to vector<152x256xf32>
    %21 = arith.maximumf %19, %20 : vector<152x256xf32>
    %c0_18 = arith.constant 0 : index
    %c0_19 = arith.constant 0 : index
    %22 = vector.load %arg8[%c0_18, %c0_19] : memref<256x3xf32, #tpu.memory_space<vmem>>, vector<256x3xf32>
    %cst_20 = arith.constant dense<0.000000e+00> : vector<152x3xf32>
    %23 = tpu.matmul %21, %22, %cst_20 {dimension_numbers = #tpu.dot_dimension_numbers<[1], [0], [0], [1], [0, 0, 1, 1], [], []>} : vector<152x256xf32>, vector<256x3xf32>, vector<152x3xf32> -> vector<152x3xf32>
    %c0_21 = arith.constant 0 : index
    %c0_22 = arith.constant 0 : index
    %24 = vector.load %arg9[%c0_21, %c0_22] : memref<1x3xf32, #tpu.memory_space<vmem>>, vector<1x3xf32>
    %25 = vector.broadcast %24 : vector<1x3xf32> to vector<152x3xf32>
    %26 = arith.addf %23, %25 : vector<152x3xf32>
    %c0_23 = arith.constant 0 : index
    %c0_24 = arith.constant 0 : index
    %27 = vector.load %arg10[%c0_23, %c0_24] : memref<152x3xf32, #tpu.memory_space<vmem>>, vector<152x3xf32>
    tpu.vector_store %arg10[%c0_23, %c0_24], %26 {strides = array<i32>} : memref<152x3xf32, #tpu.memory_space<vmem>>, vector<152x3xf32>,
    return
  }
  func.func @transform_0(%arg0: i32) -> (i32, i32) {
    %c0_i32 = arith.constant 0 : i32
    %c0_i32_0 = arith.constant 0 : i32
    return %arg0, %c0_i32 : i32, i32
  }
  func.func @transform_1(%arg0: i32) -> (i32, i32) {
    %c0_i32 = arith.constant 0 : i32
    %c0_i32_0 = arith.constant 0 : i32
    %c0_i32_1 = arith.constant 0 : i32
    return %c0_i32, %c0_i32_0 : i32, i32
  }
  func.func @transform_2(%arg0: i32) -> (i32, i32) {
    %c0_i32 = arith.constant 0 : i32
    %c0_i32_0 = arith.constant 0 : i32
    %c0_i32_1 = arith.constant 0 : i32
    return %c0_i32, %c0_i32_0 : i32, i32
  }
  func.func @transform_3(%arg0: i32) -> (i32, i32) {
    %c0_i32 = arith.constant 0 : i32
    %c0_i32_0 = arith.constant 0 : i32
    %c0_i32_1 = arith.constant 0 : i32
    return %c0_i32, %c0_i32_0 : i32, i32
  }
  func.func @transform_4(%arg0: i32) -> (i32, i32) {
    %c0_i32 = arith.constant 0 : i32
    %c0_i32_0 = arith.constant 0 : i32
    %c0_i32_1 = arith.constant 0 : i32
    return %c0_i32, %c0_i32_0 : i32, i32
  }
  func.func @transform_5(%arg0: i32) -> (i32, i32) {
    %c0_i32 = arith.constant 0 : i32
    %c0_i32_0 = arith.constant 0 : i32
    %c0_i32_1 = arith.constant 0 : i32
    return %c0_i32, %c0_i32_0 : i32, i32
  }
  func.func @transform_6(%arg0: i32) -> (i32, i32) {
    %c0_i32 = arith.constant 0 : i32
    %c0_i32_0 = arith.constant 0 : i32
    %c0_i32_1 = arith.constant 0 : i32
    return %c0_i32, %c0_i32_0 : i32, i32
  }
  func.func @transform_7(%arg0: i32) -> (i32, i32) {
    %c0_i32 = arith.constant 0 : i32
    %c0_i32_0 = arith.constant 0 : i32
    %c0_i32_1 = arith.constant 0 : i32
    return %c0_i32, %c0_i32_0 : i32, i32
  }
  func.func @transform_8(%arg0: i32) -> (i32, i32) {
    %c0_i32 = arith.constant 0 : i32
    %c0_i32_0 = arith.constant 0 : i32
    %c0_i32_1 = arith.constant 0 : i32
    return %c0_i32, %c0_i32_0 : i32, i32
  }
  func.func @transform_9(%arg0: i32) -> (i32, i32) {
    %c0_i32 = arith.constant 0 : i32
    %c0_i32_0 = arith.constant 0 : i32
    return %arg0, %c0_i32 : i32, i32
  }
}

</mosaic_0001>

<llo_original>
// kernel: tpu_custom_call.1
$region0: #{tpu_custom_call.1}
  #allocation0 [shape = 'u32[]', space=smem, size = 0x4, offset = 0x4, fixed_abs, tag = 'smem constant byte address 0x4 - core index']
  #allocation1 [shape = 'u32[72,128]{1,0:T(1,128)}', space=vmem, size = 0x9000, scoped, tag = 'internal scratch']
  %s0 = inlined_call_operand.vmem [shape: f32[300,16], index: 0, kind: input, shape index: {}]
  %s1 = inlined_call_operand.vmem [shape: f32[16,256], index: 1, kind: input, shape index: {}]
  %s2 = inlined_call_operand.vmem [shape: f32[1,256], index: 2, kind: input, shape index: {}]
  %s3 = inlined_call_operand.vmem [shape: f32[256,256], index: 3, kind: input, shape index: {}]
  %s4 = inlined_call_operand.vmem [shape: f32[1,256], index: 4, kind: input, shape index: {}]
  %s5 = inlined_call_operand.hbm [shape: f32[256,256], index: 5, kind: input, shape index: {}]
  %s6 = inlined_call_operand.vmem [shape: f32[1,256], index: 6, kind: input, shape index: {}]
  %s7 = inlined_call_operand.vmem [shape: f32[256,3], index: 7, kind: input, shape index: {}]
  %s8 = inlined_call_operand.vmem [shape: f32[1,3], index: 8, kind: input, shape index: {}]
  %s9 = inlined_call_operand.vmem [shape: f32[300,3], index: 9, kind: output, shape index: {}]
  %s10 = sld [smem:[#allocation0]]
  $region73: #{tpu_custom_call.1} parent=0
    _
  %s12 = ssub.s32 1, %s10
  %s13 = scalar_select 0, %s12, %s10
  $region1: #{tpu_custom_call.1} parent=0
    #allocation2 [shape = 'u8[262144]{0}', space=vmem, size = 0x40000, scoped, tag = 'input window, operand 5, single buffered']
    #allocation3 [shape = 's32[2]{0}', space=sflag, size = 0x8, scoped, tag = 'scoped memory for tpu_custom_call.1']
    %14 = vsyncpa [#allocation3], 0
    loop: start=0, step=1, limit=4
    $region2: #{tpu_custom_call.1} parent=1 // loop_pre_header
      _
    $region3: #{tpu_custom_call.1} parent=1 // loop_header
      %s16 = sphi 0, %s20
      %p17 = scmp.ge.s32.totalorder %s16, 4
      %s26 = sphi 0, %s28
      %s29 = sphi 0, %s26
      %s30 = sphi 0, %s29
      %s46 = sphi 0, %s30
      %s50 = sphi 0, %s50
      %s52 = sphi 0, %s50
      %s53 = sphi 0, %s52
      %s67 = sphi 0, %s53
      %s71 = sphi 0, %s71
      %s73 = sphi 0, %s71
      %s74 = sphi 0, %s73
      %s88 = sphi 0, %s74
      %s92 = sphi 0, %s92
      %s94 = sphi 0, %s92
      %s95 = sphi 0, %s94
      %s109 = sphi 0, %s95
      %s113 = sphi 0, %s113
      %s115 = sphi 0, %s113
      %s116 = sphi 0, %s115
      %s130 = sphi 0, %s116
      %s134 = sphi 0, %s134
      %s136 = sphi 0, %s134
      %s137 = sphi 0, %s136
      %s151 = sphi 0, %s137
      %s155 = sphi 0, %s155
      %s157 = sphi 0, %s155
      %s158 = sphi 0, %s157
      %s172 = sphi 0, %s158
      %s176 = sphi 0, %s176
      %s178 = sphi 0, %s176
      %s179 = sphi 0, %s178
      %s193 = sphi 0, %s179
      %s197 = sphi 0, %s197
      %s199 = sphi 0, %s197
      %s200 = sphi 0, %s199
      %s214 = sphi 0, %s200
      %s220 = sphi 0, %s222
      %s223 = sphi 0, %s220
      %s224 = sphi 0, %s223
      %s240 = sphi 0, %s224
    $region4: #{tpu_custom_call.1} parent=1 // loop_header_branch
      %19 = sbr.rel (%p17) target = $region8
    $region5: #{tpu_custom_call.1} parent=1 // loop_body
      %s21 = ssub.s32 %s16, 1
      %s22 = ssub.s32 %s16, 2
      %s23 = sadd.s32 %s16, 1
      %s24 = ssub.s32 %s16, %s23
      %p25 = scmp.eq.s32.totalorder %s24, 0
      %s27 = sadd.s32 %s26, 1
      %s28 = scalar_select %p25, %s26, %s27
      %p31 = pneg %p25
      %p32 = scmp.eq.s32.totalorder %s16, 1
      %p33 = por %p31, %p32
      %p34 = scmp.ne.s32.totalorder %s26, %s29
      %p35 = scmp.eq.s32.totalorder %s16, 0
      %p36 = por %p34, %p35
      %p37 = scmp.ne.s32.totalorder %s26, %s29
      %p38 = scmp.eq.s32.totalorder %s21, 1
      %p39 = por %p37, %p38
      %p40 = scmp.ne.s32.totalorder %s29, %s30
      %p41 = scmp.eq.s32.totalorder %s21, 0
      %p42 = por %p40, %p41
      %p43 = scmp.ne.s32.totalorder %s29, %s30
      %p44 = scmp.eq.s32.totalorder %s22, 1
      %p45 = por %p43, %p44
      %p47 = scmp.ne.s32.totalorder %s30, %s46
      %p48 = scmp.eq.s32.totalorder %s22, 0
      %p49 = por %p47, %p48
      %s51 = sadd.s32 %s50, 1
      %p54 = scmp.eq.s32.totalorder %s16, 1
      %p55 = scmp.ne.s32.totalorder %s50, %s52
      %p56 = scmp.eq.s32.totalorder %s16, 0
      %p57 = por %p55, %p56
      %p58 = scmp.ne.s32.totalorder %s50, %s52
      %p59 = scmp.eq.s32.totalorder %s21, 1
      %p60 = por %p58, %p59
      %p61 = scmp.ne.s32.totalorder %s52, %s53
      %p62 = scmp.eq.s32.totalorder %s21, 0
      %p63 = por %p61, %p62
      %p64 = scmp.ne.s32.totalorder %s52, %s53
      %p65 = scmp.eq.s32.totalorder %s22, 1
      %p66 = por %p64, %p65
      %p68 = scmp.ne.s32.totalorder %s53, %s67
      %p69 = scmp.eq.s32.totalorder %s22, 0
      %p70 = por %p68, %p69
      %s72 = sadd.s32 %s71, 1
      %p75 = scmp.eq.s32.totalorder %s16, 1
      %p76 = scmp.ne.s32.totalorder %s71, %s73
      %p77 = scmp.eq.s32.totalorder %s16, 0
      %p78 = por %p76, %p77
      %p79 = scmp.ne.s32.totalorder %s71, %s73
      %p80 = scmp.eq.s32.totalorder %s21, 1
      %p81 = por %p79, %p80
      %p82 = scmp.ne.s32.totalorder %s73, %s74
      %p83 = scmp.eq.s32.totalorder %s21, 0
      %p84 = por %p82, %p83
      %p85 = scmp.ne.s32.totalorder %s73, %s74
      %p86 = scmp.eq.s32.totalorder %s22, 1
      %p87 = por %p85, %p86
      %p89 = scmp.ne.s32.totalorder %s74, %s88
      %p90 = scmp.eq.s32.totalorder %s22, 0
      %p91 = por %p89, %p90
      %s93 = sadd.s32 %s92, 1
      %p96 = scmp.eq.s32.totalorder %s16, 1
      %p97 = scmp.ne.s32.totalorder %s92, %s94
      %p98 = scmp.eq.s32.totalorder %s16, 0
      %p99 = por %p97, %p98
      %p100 = scmp.ne.s32.totalorder %s92, %s94
      %p101 = scmp.eq.s32.totalorder %s21, 1
      %p102 = por %p100, %p101
      %p103 = scmp.ne.s32.totalorder %s94, %s95
      %p104 = scmp.eq.s32.totalorder %s21, 0
      %p105 = por %p103, %p104
      %p106 = scmp.ne.s32.totalorder %s94, %s95
      %p107 = scmp.eq.s32.totalorder %s22, 1
      %p108 = por %p106, %p107
      %p110 = scmp.ne.s32.totalorder %s95, %s109
      %p111 = scmp.eq.s32.totalorder %s22, 0
      %p112 = por %p110, %p111
      %s114 = sadd.s32 %s113, 1
      %p117 = scmp.eq.s32.totalorder %s16, 1
      %p118 = scmp.ne.s32.totalorder %s113, %s115
      %p119 = scmp.eq.s32.totalorder %s16, 0
      %p120 = por %p118, %p119
      %p121 = scmp.ne.s32.totalorder %s113, %s115
      %p122 = scmp.eq.s32.totalorder %s21, 1
      %p123 = por %p121, %p122
      %p124 = scmp.ne.s32.totalorder %s115, %s116
      %p125 = scmp.eq.s32.totalorder %s21, 0
      %p126 = por %p124, %p125
      %p127 = scmp.ne.s32.totalorder %s115, %s116
      %p128 = scmp.eq.s32.totalorder %s22, 1
      %p129 = por %p127, %p128
      %p131 = scmp.ne.s32.totalorder %s116, %s130
      %p132 = scmp.eq.s32.totalorder %s22, 0
      %p133 = por %p131, %p132
      %s135 = sadd.s32 %s134, 1
      %p138 = scmp.eq.s32.totalorder %s16, 1
      %p139 = scmp.ne.s32.totalorder %s134, %s136
      %p140 = scmp.eq.s32.totalorder %s16, 0
      %p141 = por %p139, %p140
      %p142 = scmp.ne.s32.totalorder %s134, %s136
      %p143 = scmp.eq.s32.totalorder %s21, 1
      %p144 = por %p142, %p143
      %p145 = scmp.ne.s32.totalorder %s136, %s137
      %p146 = scmp.eq.s32.totalorder %s21, 0
      %p147 = por %p145, %p146
      %p148 = scmp.ne.s32.totalorder %s136, %s137
      %p149 = scmp.eq.s32.totalorder %s22, 1
      %p150 = por %p148, %p149
      %p152 = scmp.ne.s32.totalorder %s137, %s151
      %p153 = scmp.eq.s32.totalorder %s22, 0
      %p154 = por %p152, %p153
      %s156 = sadd.s32 %s155, 1
      %p159 = scmp.eq.s32.totalorder %s16, 1
      %p160 = scmp.ne.s32.totalorder %s155, %s157
      %p161 = scmp.eq.s32.totalorder %s16, 0
      %p162 = por %p160, %p161
      %p163 = scmp.ne.s32.totalorder %s155, %s157
      %p164 = scmp.eq.s32.totalorder %s21, 1
      %p165 = por %p163, %p164
      %p166 = scmp.ne.s32.totalorder %s157, %s158
      %p167 = scmp.eq.s32.totalorder %s21, 0
      %p168 = por %p166, %p167
      %p169 = scmp.ne.s32.totalorder %s157, %s158
      %p170 = scmp.eq.s32.totalorder %s22, 1
      %p171 = por %p169, %p170
      %p173 = scmp.ne.s32.totalorder %s158, %s172
      %p174 = scmp.eq.s32.totalorder %s22, 0
      %p175 = por %p173, %p174
      %s177 = sadd.s32 %s176, 1
      %p180 = scmp.eq.s32.totalorder %s16, 1
      %p181 = scmp.ne.s32.totalorder %s176, %s178
      %p182 = scmp.eq.s32.totalorder %s16, 0
      %p183 = por %p181, %p182
      %p184 = scmp.ne.s32.totalorder %s176, %s178
      %p185 = scmp.eq.s32.totalorder %s21, 1
      %p186 = por %p184, %p185
      %p187 = scmp.ne.s32.totalorder %s178, %s179
      %p188 = scmp.eq.s32.totalorder %s21, 0
      %p189 = por %p187, %p188
      %p190 = scmp.ne.s32.totalorder %s178, %s179
      %p191 = scmp.eq.s32.totalorder %s22, 1
      %p192 = por %p190, %p191
      %p194 = scmp.ne.s32.totalorder %s179, %s193
      %p195 = scmp.eq.s32.totalorder %s22, 0
      %p196 = por %p194, %p195
      %s198 = sadd.s32 %s197, 1
      %p201 = scmp.eq.s32.totalorder %s16, 1
      %p202 = scmp.ne.s32.totalorder %s197, %s199
      %p203 = scmp.eq.s32.totalorder %s16, 0
      %p204 = por %p202, %p203
      %p205 = scmp.ne.s32.totalorder %s197, %s199
      %p206 = scmp.eq.s32.totalorder %s21, 1
      %p207 = por %p205, %p206
      %p208 = scmp.ne.s32.totalorder %s199, %s200
      %p209 = scmp.eq.s32.totalorder %s21, 0
      %p210 = por %p208, %p209
      %p211 = scmp.ne.s32.totalorder %s199, %s200
      %p212 = scmp.eq.s32.totalorder %s22, 1
      %p213 = por %p211, %p212
      %p215 = scmp.ne.s32.totalorder %s200, %s214
      %p216 = scmp.eq.s32.totalorder %s22, 0
      %p217 = por %p215, %p216
      %s218 = ssub.s32 %s16, %s23
      %p219 = scmp.eq.s32.totalorder %s218, 0
      %s221 = sadd.s32 %s220, 1
      %s222 = scalar_select %p219, %s220, %s221
      %p225 = pneg %p219
      %p226 = scmp.eq.s32.totalorder %s16, 1
      %p227 = por %p225, %p226
      %p228 = scmp.ne.s32.totalorder %s220, %s223
      %p229 = scmp.eq.s32.totalorder %s16, 0
      %p230 = por %p228, %p229
      %p231 = scmp.ne.s32.totalorder %s220, %s223
      %p232 = scmp.eq.s32.totalorder %s21, 1
      %p233 = por %p231, %p232
      %p234 = scmp.ne.s32.totalorder %s223, %s224
      %p235 = scmp.eq.s32.totalorder %s21, 0
      %p236 = por %p234, %p235
      %p237 = scmp.ne.s32.totalorder %s223, %s224
      %p238 = scmp.eq.s32.totalorder %s22, 1
      %p239 = por %p237, %p238
      %p241 = scmp.ne.s32.totalorder %s224, %s240
      %p242 = scmp.eq.s32.totalorder %s22, 0
      %p243 = por %p241, %p242
      %p244 = scmp.le.s32.totalorder 1, %s16
      %p245 = scmp.lt.s32.totalorder %s16, 3
      %p246 = pnand %p244, %p245
      %p247 = pneg %p246
      // Predicated region
      $region9: #{tpu_custom_call.1} parent=5 // pred_check
        _
      $region10: #{tpu_custom_call.1} parent=5 // pred_check_branch
        %249 = sbr.rel (%p246) target = $region12
      $region11: #{tpu_custom_call.1} parent=5 // pred_region
        %s250 = ssub.s32 %s16, 1
        // Predicated region
        $region13: #{tpu_custom_call.1} parent=11 // pred_check
          %p251 = pneg %p63
        $region14: #{tpu_custom_call.1} parent=11 // pred_check_branch
          %253 = sbr.rel (%p251) target = $region16
        $region15: #{tpu_custom_call.1} parent=11 // pred_region
          _
        $region16: #{tpu_custom_call.1} parent=11 // pred_fallthru
          _
        // Predicated region
        $region17: #{tpu_custom_call.1} parent=11 // pred_check
          %p254 = pneg %p84
        $region18: #{tpu_custom_call.1} parent=11 // pred_check_branch
          %256 = sbr.rel (%p254) target = $region20
        $region19: #{tpu_custom_call.1} parent=11 // pred_region
          _
        $region20: #{tpu_custom_call.1} parent=11 // pred_fallthru
          _
        // Predicated region
        $region21: #{tpu_custom_call.1} parent=11 // pred_check
          %p257 = pneg %p105
        $region22: #{tpu_custom_call.1} parent=11 // pred_check_branch
          %259 = sbr.rel (%p257) target = $region24
        $region23: #{tpu_custom_call.1} parent=11 // pred_region
          _
        $region24: #{tpu_custom_call.1} parent=11 // pred_fallthru
          _
        // Predicated region
        $region25: #{tpu_custom_call.1} parent=11 // pred_check
          %p260 = pneg %p126
        $region26: #{tpu_custom_call.1} parent=11 // pred_check_branch
          %262 = sbr.rel (%p260) target = $region28
        $region27: #{tpu_custom_call.1} parent=11 // pred_region
          _
        $region28: #{tpu_custom_call.1} parent=11 // pred_fallthru
          _
        // Predicated region
        $region29: #{tpu_custom_call.1} parent=11 // pred_check
          %p263 = pneg %p147
        $region30: #{tpu_custom_call.1} parent=11 // pred_check_branch
          %265 = sbr.rel (%p263) target = $region32
        $region31: #{tpu_custom_call.1} parent=11 // pred_region
          %267 = vsyncadd [#allocation3], 0
          %s268 = sshll.u32 %s5, 4
          %s269 = int_to_ptr.hbm [resolvable:$true] %s268
          %s270 = sshll.u32 [#allocation2], 4
          %s271 = int_to_ptr.vmem [resolvable:$true] %s270
          %276 = dma.hbm_to_vmem [thread:$0]  %s269, 8192, %s271, [#allocation3], 256, 256, 16
        $region32: #{tpu_custom_call.1} parent=11 // pred_fallthru
          _
        // Predicated region
        $region33: #{tpu_custom_call.1} parent=11 // pred_check
          %p277 = pneg %p168
        $region34: #{tpu_custom_call.1} parent=11 // pred_check_branch
          %279 = sbr.rel (%p277) target = $region36
        $region35: #{tpu_custom_call.1} parent=11 // pred_region
          _
        $region36: #{tpu_custom_call.1} parent=11 // pred_fallthru
          _
        // Predicated region
        $region37: #{tpu_custom_call.1} parent=11 // pred_check
          %p280 = pneg %p189
        $region38: #{tpu_custom_call.1} parent=11 // pred_check_branch
          %282 = sbr.rel (%p280) target = $region40
        $region39: #{tpu_custom_call.1} parent=11 // pred_region
          _
        $region40: #{tpu_custom_call.1} parent=11 // pred_fallthru
          _
        // Predicated region
        $region41: #{tpu_custom_call.1} parent=11 // pred_check
          %p283 = pneg %p210
        $region42: #{tpu_custom_call.1} parent=11 // pred_check_branch
          %285 = sbr.rel (%p283) target = $region44
        $region43: #{tpu_custom_call.1} parent=11 // pred_region
          _
        $region44: #{tpu_custom_call.1} parent=11 // pred_fallthru
          _
      $region12: #{tpu_custom_call.1} parent=5 // pred_fallthru
        _
      %p286 = scmp.lt.s32.totalorder %s16, 2
      // Predicated region
      $region45: #{tpu_custom_call.1} parent=5 // pred_check
        %p287 = pneg %p286
      $region46: #{tpu_custom_call.1} parent=5 // pred_check_branch
        %289 = sbr.rel (%p287) target = $region48
      $region47: #{tpu_custom_call.1} parent=5 // pred_region
        // Predicated region
        $region49: #{tpu_custom_call.1} parent=47 // pred_check
          %p290 = pneg %p36
        $region50: #{tpu_custom_call.1} parent=47 // pred_check_branch
          %292 = sbr.rel (%p290) target = $region52
        $region51: #{tpu_custom_call.1} parent=47 // pred_region
          %s293 = smul.u32 19, %s16
          %p294 = scmp.lt.s32.totalorder %s293, 37
          %s295 = scalar_select %p294, %s293, 37
          %s296 = smul.addr %s295, 8
          %s297 = scalar_lea.vmem %s0, %s296
          %s298 = smul.u32 19, %s16
        $region52: #{tpu_custom_call.1} parent=47 // pred_fallthru
          _
      $region48: #{tpu_custom_call.1} parent=5 // pred_fallthru
        _
      %p299 = scmp.le.s32.totalorder 1, %s16
      %p300 = scmp.lt.s32.totalorder %s16, 3
      %p301 = pnand %p299, %p300
      %p302 = pneg %p301
      // Predicated region
      $region53: #{tpu_custom_call.1} parent=5 // pred_check
        _
      $region54: #{tpu_custom_call.1} parent=5 // pred_check_branch
        %304 = sbr.rel (%p301) target = $region56
      $region55: #{tpu_custom_call.1} parent=5 // pred_region
        %s305 = ssub.s32 %s16, 1
        // Predicated region
        $region57: #{tpu_custom_call.1} parent=55 // pred_check
          %p306 = pneg %p147
        $region58: #{tpu_custom_call.1} parent=55 // pred_check_branch
          %308 = sbr.rel (%p306) target = $region60
        $region59: #{tpu_custom_call.1} parent=55 // pred_region
          %310 = dma.done [#allocation3], 8192
        $region60: #{tpu_custom_call.1} parent=55 // pred_fallthru
          _
        %s311 = smul.u32 19, %s21
        %p312 = scmp.lt.s32.totalorder %s311, 37
        %s313 = scalar_select %p312, %s311, 37
        %s314 = smul.addr %s313, 8
        %s315 = scalar_lea.vmem %s0, %s314
        %p316 = pneg %p42
        %p317 = pneg %p39
        %p318 = pneg %p63
        %p319 = pneg %p60
        %p320 = pneg %p84
        %p321 = pneg %p81
        %p322 = pneg %p105
        %p323 = pneg %p102
        %p324 = pneg %p126
        %p325 = pneg %p123
        %p326 = pneg %p147
        %p327 = pneg %p144
        %p328 = pneg %p168
        %p329 = pneg %p165
        %p330 = pneg %p189
        %p331 = pneg %p186
        %p332 = pneg %p210
        %p333 = pneg %p207
        %p334 = pneg %p236
        %p335 = pneg %p233
        %s336 = smul.u32 19, %s21
        %p337 = scmp.lt.s32.totalorder %s336, 37
        %s338 = scalar_select %p337, %s336, 37
        %s339 = smul.addr %s338, 8
        %s340 = scalar_lea.vmem %s9, %s339
        %s341 = smul.u32 19, %s21
        %p342 = scmp.lt.s32.totalorder %s341, 37
        %s343 = scalar_select %p342, %s341, 37
        %s344 = smul.addr %s343, 8
        %s345 = scalar_lea.vmem %s0, %s344
        %s346 = smul.u32 19, %s21
        %s347 = smul.u32 19, %s21
        %p348 = scmp.lt.s32.totalorder %s347, 37
        %s349 = scalar_select %p348, %s347, 37
        %s350 = smul.addr %s349, 8
        %s351 = scalar_lea.vmem %s9, %s350
        %s352 = smul.u32 19, %s21
        %v353 = vld [vmem:[%s345] sm:$0xff]
        %v354 = vld [vmem:[%s345 + $0x8] sm:$0xff]
        %v355 = vld [vmem:[%s345 + $0x10] sm:$0xff]
        %v356 = vld [vmem:[%s345 + $0x18] sm:$0xff]
        %v357 = vld [vmem:[%s345 + $0x20] sm:$0xff]
        %v358 = vld [vmem:[%s345 + $0x28] sm:$0xff]
        %v359 = vld [vmem:[%s345 + $0x30] sm:$0xff]
        %v360 = vld [vmem:[%s345 + $0x38] sm:$0xff]
        %v361 = vld [vmem:[%s345 + $0x40] sm:$0xff]
        %v362 = vld [vmem:[%s345 + $0x48] sm:$0xff]
        %v363 = vld [vmem:[%s345 + $0x50] sm:$0xff]
        %v364 = vld [vmem:[%s345 + $0x58] sm:$0xff]
        %v365 = vld [vmem:[%s345 + $0x60] sm:$0xff]
        %v366 = vld [vmem:[%s345 + $0x68] sm:$0xff]
        %v367 = vld [vmem:[%s345 + $0x70] sm:$0xff]
        %v368 = vld [vmem:[%s345 + $0x78] sm:$0xff]
        %v369 = vld [vmem:[%s345 + $0x80] sm:$0xff]
        %v370 = vld [vmem:[%s345 + $0x88] sm:$0xff]
        %v371 = vld [vmem:[%s345 + $0x90] sm:$0xff]
        %v372 = vld [vmem:[%s1] sm:$0xff]
        %v373 = vld [vmem:[%s1 + $0x8] sm:$0xff]
        %v374 = vld [vmem:[%s1 + $0x10] sm:$0xff]
        %v375 = vld [vmem:[%s1 + $0x18] sm:$0xff]
        %v376 = vld [vmem:[%s2] sm:$0x3]
        %v378 = vperm.slane %v376, 0
        %v379 = vperm.slane %v376, 1
        %vm382 = vcmask 130048
        %v384 = vsel %vm382, %v353, 0
        %v387 = vsel %vm382, %v354, 0
        %v390 = vsel %vm382, %v355, 0
        %v393 = vsel %vm382, %v356, 0
        %v396 = vsel %vm382, %v357, 0
        %v399 = vsel %vm382, %v358, 0
        %v402 = vsel %vm382, %v359, 0
        %v405 = vsel %vm382, %v360, 0
        %v408 = vsel %vm382, %v361, 0
        %v411 = vsel %vm382, %v362, 0
        %v414 = vsel %vm382, %v363, 0
        %v417 = vsel %vm382, %v364, 0
        %v420 = vsel %vm382, %v365, 0
        %v423 = vsel %vm382, %v366, 0
        %v426 = vsel %vm382, %v367, 0
        %v429 = vsel %vm382, %v368, 0
        %v432 = vsel %vm382, %v369, 0
        %v435 = vsel %vm382, %v370, 0
        %v438 = vsel %vm382, %v371, 0
        %440 = vmatpush.msra.mxu0 0.0
        %441 = vmatpush.msra.mxu0 0.0
        %442 = vmatpush.msra.mxu0 0.0
        %443 = vmatpush.msra.mxu0 0.0
        %444 = vmatpush.msra.mxu0 0.0
        %445 = vmatpush.msra.mxu0 0.0
        %446 = vmatpush.msra.mxu0 0.0
        %447 = vmatpush.msra.mxu0 0.0
        %448 = vmatpush.msra.mxu0 0.0
        %449 = vmatpush.msra.mxu0 0.0
        %450 = vmatpush.msra.mxu0 0.0
        %451 = vmatpush.msra.mxu0 0.0
        %452 = vmatpush.msra.mxu0 0.0
        %453 = vmatpush.msra.mxu0 0.0
        %454 = vmatpush.msra.mxu0 %v374
        %455 = vmatpush.msra.mxu0 %v372
        %456 = vmatmul.f32.gmra.mxu0 %v384
        %v457 = vpop.f32.mrf.mxu0
        %v458 = vadd.f32 %v378, %v457
        %459 = vmatmul.f32.gmra.mxu0 %v387
        %v460 = vpop.f32.mrf.mxu0
        %v461 = vadd.f32 %v378, %v460
        %462 = vmatmul.f32.gmra.mxu0 %v390
        %v463 = vpop.f32.mrf.mxu0
        %v464 = vadd.f32 %v378, %v463
        %465 = vmatmul.f32.gmra.mxu0 %v393
        %v466 = vpop.f32.mrf.mxu0
        %v467 = vadd.f32 %v378, %v466
        %468 = vmatmul.f32.gmra.mxu0 %v396
        %v469 = vpop.f32.mrf.mxu0
        %v470 = vadd.f32 %v378, %v469
        %471 = vmatmul.f32.gmra.mxu0 %v399
        %v472 = vpop.f32.mrf.mxu0
        %v473 = vadd.f32 %v378, %v472
        %474 = vmatmul.f32.gmra.mxu0 %v402
        %v475 = vpop.f32.mrf.mxu0
        %v476 = vadd.f32 %v378, %v475
        %477 = vmatmul.f32.gmra.mxu0 %v405
        %v478 = vpop.f32.mrf.mxu0
        %v479 = vadd.f32 %v378, %v478
        %480 = vmatmul.f32.gmra.mxu0 %v408
        %v481 = vpop.f32.mrf.mxu0
        %v482 = vadd.f32 %v378, %v481
        %483 = vmatmul.f32.gmra.mxu0 %v411
        %v484 = vpop.f32.mrf.mxu0
        %v485 = vadd.f32 %v378, %v484
        %486 = vmatmul.f32.gmra.mxu0 %v414
        %v487 = vpop.f32.mrf.mxu0
        %v488 = vadd.f32 %v378, %v487
        %489 = vmatmul.f32.gmra.mxu0 %v417
        %v490 = vpop.f32.mrf.mxu0
        %v491 = vadd.f32 %v378, %v490
        %492 = vmatmul.f32.gmra.mxu0 %v420
        %v493 = vpop.f32.mrf.mxu0
        %v494 = vadd.f32 %v378, %v493
        %495 = vmatmul.f32.gmra.mxu0 %v423
        %v496 = vpop.f32.mrf.mxu0
        %v497 = vadd.f32 %v378, %v496
        %498 = vmatmul.f32.gmra.mxu0 %v426
        %v499 = vpop.f32.mrf.mxu0
        %v500 = vadd.f32 %v378, %v499
        %501 = vmatmul.f32.gmra.mxu0 %v429
        %v502 = vpop.f32.mrf.mxu0
        %v503 = vadd.f32 %v378, %v502
        %504 = vmatmul.f32.gmra.mxu0 %v432
        %v505 = vpop.f32.mrf.mxu0
        %v506 = vadd.f32 %v378, %v505
        %507 = vmatmul.f32.gmra.mxu0 %v435
        %v508 = vpop.f32.mrf.mxu0
        %v509 = vadd.f32 %v378, %v508
        %510 = vmatmul.f32.gmra.mxu0 %v438
        %v511 = vpop.f32.mrf.mxu0
        %v512 = vadd.f32 %v378, %v511
        %513 = vdwg.mxu0
        %514 = vmatpush.msra.mxu0 0.0
        %515 = vmatpush.msra.mxu0 0.0
        %516 = vmatpush.msra.mxu0 0.0
        %517 = vmatpush.msra.mxu0 0.0
        %518 = vmatpush.msra.mxu0 0.0
        %519 = vmatpush.msra.mxu0 0.0
        %520 = vmatpush.msra.mxu0 0.0
        %521 = vmatpush.msra.mxu0 0.0
        %522 = vmatpush.msra.mxu0 0.0
        %523 = vmatpush.msra.mxu0 0.0
        %524 = vmatpush.msra.mxu0 0.0
        %525 = vmatpush.msra.mxu0 0.0
        %526 = vmatpush.msra.mxu0 0.0
        %527 = vmatpush.msra.mxu0 0.0
        %528 = vmatpush.msra.mxu0 %v375
        %529 = vmatpush.msra.mxu0 %v373
        %530 = vmatmul.f32.gmra.mxu0 %v384
        %v531 = vpop.f32.mrf.mxu0
        %v532 = vadd.f32 %v379, %v531
        %533 = vmatmul.f32.gmra.mxu0 %v387
        %v534 = vpop.f32.mrf.mxu0
        %v535 = vadd.f32 %v379, %v534
        %536 = vmatmul.f32.gmra.mxu0 %v390
        %v537 = vpop.f32.mrf.mxu0
        %v538 = vadd.f32 %v379, %v537
        %539 = vmatmul.f32.gmra.mxu0 %v393
        %v540 = vpop.f32.mrf.mxu0
        %v541 = vadd.f32 %v379, %v540
        %542 = vmatmul.f32.gmra.mxu0 %v396
        %v543 = vpop.f32.mrf.mxu0
        %v544 = vadd.f32 %v379, %v543
        %545 = vmatmul.f32.gmra.mxu0 %v399
        %v546 = vpop.f32.mrf.mxu0
        %v547 = vadd.f32 %v379, %v546
        %548 = vmatmul.f32.gmra.mxu0 %v402
        %v549 = vpop.f32.mrf.mxu0
        %v550 = vadd.f32 %v379, %v549
        %551 = vmatmul.f32.gmra.mxu0 %v405
        %v552 = vpop.f32.mrf.mxu0
        %v553 = vadd.f32 %v379, %v552
        %554 = vmatmul.f32.gmra.mxu0 %v408
        %v555 = vpop.f32.mrf.mxu0
        %v556 = vadd.f32 %v379, %v555
        %557 = vmatmul.f32.gmra.mxu0 %v411
        %v558 = vpop.f32.mrf.mxu0
        %v559 = vadd.f32 %v379, %v558
        %560 = vmatmul.f32.gmra.mxu0 %v414
        %v561 = vpop.f32.mrf.mxu0
        %v562 = vadd.f32 %v379, %v561
        %563 = vmatmul.f32.gmra.mxu0 %v417
        %v564 = vpop.f32.mrf.mxu0
        %v565 = vadd.f32 %v379, %v564
        %566 = vmatmul.f32.gmra.mxu0 %v420
        %v567 = vpop.f32.mrf.mxu0
        %v568 = vadd.f32 %v379, %v567
        %569 = vmatmul.f32.gmra.mxu0 %v423
        %v570 = vpop.f32.mrf.mxu0
        %v571 = vadd.f32 %v379, %v570
        %572 = vmatmul.f32.gmra.mxu0 %v426
        %v573 = vpop.f32.mrf.mxu0
        %v574 = vadd.f32 %v379, %v573
        %575 = vmatmul.f32.gmra.mxu0 %v429
        %v576 = vpop.f32.mrf.mxu0
        %v577 = vadd.f32 %v379, %v576
        %578 = vmatmul.f32.gmra.mxu0 %v432
        %v579 = vpop.f32.mrf.mxu0
        %v580 = vadd.f32 %v379, %v579
        %581 = vmatmul.f32.gmra.mxu0 %v435
        %v582 = vpop.f32.mrf.mxu0
        %v583 = vadd.f32 %v379, %v582
        %584 = vmatmul.f32.gmra.mxu0 %v438
        %v585 = vpop.f32.mrf.mxu0
        %v586 = vadd.f32 %v379, %v585
        %587 = vdwg.mxu0
        %v588 = vmax.f32 %v458, 0.0
        %v589 = vmax.f32 %v532, 0.0
        %v590 = vmax.f32 %v461, 0.0
        %v591 = vmax.f32 %v535, 0.0
        %v592 = vmax.f32 %v464, 0.0
        %v593 = vmax.f32 %v538, 0.0
        %v594 = vmax.f32 %v467, 0.0
        %v595 = vmax.f32 %v541, 0.0
        %v596 = vmax.f32 %v470, 0.0
        %v597 = vmax.f32 %v544, 0.0
        %v598 = vmax.f32 %v473, 0.0
        %v599 = vmax.f32 %v547, 0.0
        %v600 = vmax.f32 %v476, 0.0
        %v601 = vmax.f32 %v550, 0.0
        %v602 = vmax.f32 %v479, 0.0
        %v603 = vmax.f32 %v553, 0.0
        %v604 = vmax.f32 %v482, 0.0
        %v605 = vmax.f32 %v556, 0.0
        %v606 = vmax.f32 %v485, 0.0
        %v607 = vmax.f32 %v559, 0.0
        %v608 = vmax.f32 %v488, 0.0
        %v609 = vmax.f32 %v562, 0.0
        %v610 = vmax.f32 %v491, 0.0
        %v611 = vmax.f32 %v565, 0.0
        %v612 = vmax.f32 %v494, 0.0
        %v613 = vmax.f32 %v568, 0.0
        %v614 = vmax.f32 %v497, 0.0
        %v615 = vmax.f32 %v571, 0.0
        %v616 = vmax.f32 %v500, 0.0
        %v617 = vmax.f32 %v574, 0.0
        %v618 = vmax.f32 %v503, 0.0
        %v619 = vmax.f32 %v577, 0.0
        %v620 = vmax.f32 %v506, 0.0
        %v621 = vmax.f32 %v580, 0.0
        %v622 = vmax.f32 %v509, 0.0
        %v623 = vmax.f32 %v583, 0.0
        %v624 = vmax.f32 %v512, 0.0
        %v625 = vmax.f32 %v586, 0.0
        %v626 = vld [vmem:[%s3] sm:$0xff]
        %v627 = vld [vmem:[%s3 + $0x8] sm:$0xff]
        %v628 = vld [vmem:[%s3 + $0x10] sm:$0xff]
        %v629 = vld [vmem:[%s3 + $0x18] sm:$0xff]
        %v630 = vld [vmem:[%s3 + $0x20] sm:$0xff]
        %v631 = vld [vmem:[%s3 + $0x28] sm:$0xff]
        %v632 = vld [vmem:[%s3 + $0x30] sm:$0xff]
        %v633 = vld [vmem:[%s3 + $0x38] sm:$0xff]
        %v634 = vld [vmem:[%s3 + $0x40] sm:$0xff]
        %v635 = vld [vmem:[%s3 + $0x48] sm:$0xff]
        %v636 = vld [vmem:[%s3 + $0x50] sm:$0xff]
        %v637 = vld [vmem:[%s3 + $0x58] sm:$0xff]
        %v638 = vld [vmem:[%s3 + $0x60] sm:$0xff]
        %v639 = vld [vmem:[%s3 + $0x68] sm:$0xff]
        %v640 = vld [vmem:[%s3 + $0x70] sm:$0xff]
        %v641 = vld [vmem:[%s3 + $0x78] sm:$0xff]
        %v642 = vld [vmem:[%s3 + $0x80] sm:$0xff]
        %v643 = vld [vmem:[%s3 + $0x88] sm:$0xff]
        %v644 = vld [vmem:[%s3 + $0x90] sm:$0xff]
        %v645 = vld [vmem:[%s3 + $0x98] sm:$0xff]
        %v646 = vld [vmem:[%s3 + $0xa0] sm:$0xff]
        %v647 = vld [vmem:[%s3 + $0xa8] sm:$0xff]
        %v648 = vld [vmem:[%s3 + $0xb0] sm:$0xff]
        %v649 = vld [vmem:[%s3 + $0xb8] sm:$0xff]
        %v650 = vld [vmem:[%s3 + $0xc0] sm:$0xff]
        %v651 = vld [vmem:[%s3 + $0xc8] sm:$0xff]
        %v652 = vld [vmem:[%s3 + $0xd0] sm:$0xff]
        %v653 = vld [vmem:[%s3 + $0xd8] sm:$0xff]
        %v654 = vld [vmem:[%s3 + $0xe0] sm:$0xff]
        %v655 = vld [vmem:[%s3 + $0xe8] sm:$0xff]
        %v656 = vld [vmem:[%s3 + $0xf0] sm:$0xff]
        %v657 = vld [vmem:[%s3 + $0xf8] sm:$0xff]
        %v658 = vld [vmem:[%s3 + $0x100] sm:$0xff]
        %v659 = vld [vmem:[%s3 + $0x108] sm:$0xff]
        %v660 = vld [vmem:[%s3 + $0x110] sm:$0xff]
        %v661 = vld [vmem:[%s3 + $0x118] sm:$0xff]
        %v662 = vld [vmem:[%s3 + $0x120] sm:$0xff]
        %v663 = vld [vmem:[%s3 + $0x128] sm:$0xff]
        %v664 = vld [vmem:[%s3 + $0x130] sm:$0xff]
        %v665 = vld [vmem:[%s3 + $0x138] sm:$0xff]
        %v666 = vld [vmem:[%s3 + $0x140] sm:$0xff]
        %v667 = vld [vmem:[%s3 + $0x148] sm:$0xff]
        %v668 = vld [vmem:[%s3 + $0x150] sm:$0xff]
        %v669 = vld [vmem:[%s3 + $0x158] sm:$0xff]
        %v670 = vld [vmem:[%s3 + $0x160] sm:$0xff]
        %v671 = vld [vmem:[%s3 + $0x168] sm:$0xff]
        %v672 = vld [vmem:[%s3 + $0x170] sm:$0xff]
        %v673 = vld [vmem:[%s3 + $0x178] sm:$0xff]
        %v674 = vld [vmem:[%s3 + $0x180] sm:$0xff]
        %v675 = vld [vmem:[%s3 + $0x188] sm:$0xff]
        %v676 = vld [vmem:[%s3 + $0x190] sm:$0xff]
        %v677 = vld [vmem:[%s3 + $0x198] sm:$0xff]
        %v678 = vld [vmem:[%s3 + $0x1a0] sm:$0xff]
        %v679 = vld [vmem:[%s3 + $0x1a8] sm:$0xff]
        %v680 = vld [vmem:[%s3 + $0x1b0] sm:$0xff]
        %v681 = vld [vmem:[%s3 + $0x1b8] sm:$0xff]
        %v682 = vld [vmem:[%s3 + $0x1c0] sm:$0xff]
        %v683 = vld [vmem:[%s3 + $0x1c8] sm:$0xff]
        %v684 = vld [vmem:[%s3 + $0x1d0] sm:$0xff]
        %v685 = vld [vmem:[%s3 + $0x1d8] sm:$0xff]
        %v686 = vld [vmem:[%s3 + $0x1e0] sm:$0xff]
        %v687 = vld [vmem:[%s3 + $0x1e8] sm:$0xff]
        %v688 = vld [vmem:[%s3 + $0x1f0] sm:$0xff]
        %v689 = vld [vmem:[%s3 + $0x1f8] sm:$0xff]
        %v690 = vld [vmem:[%s4] sm:$0x3]
        %v692 = vperm.slane %v690, 0
        %v693 = vperm.slane %v690, 1
        %696 = vmatpush.msra.mxu0 %v656
        %697 = vmatpush.msra.mxu0 %v654
        %698 = vmatpush.msra.mxu0 %v652
        %699 = vmatpush.msra.mxu0 %v650
        %700 = vmatpush.msra.mxu0 %v648
        %701 = vmatpush.msra.mxu0 %v646
        %702 = vmatpush.msra.mxu0 %v644
        %703 = vmatpush.msra.mxu0 %v642
        %704 = vmatpush.msra.mxu0 %v640
        %705 = vmatpush.msra.mxu0 %v638
        %706 = vmatpush.msra.mxu0 %v636
        %707 = vmatpush.msra.mxu0 %v634
        %708 = vmatpush.msra.mxu0 %v632
        %709 = vmatpush.msra.mxu0 %v630
        %710 = vmatpush.msra.mxu0 %v628
        %711 = vmatpush.msra.mxu0 %v626
        %712 = vmatmul.f32.gmra.mxu0 %v588
        %v713 = vpop.f32.mrf.mxu0
        %v714 = vadd.f32 %v692, %v713
        %715 = vmatmul.f32.gmra.mxu0 %v590
        %v716 = vpop.f32.mrf.mxu0
        %v717 = vadd.f32 %v692, %v716
        %718 = vmatmul.f32.gmra.mxu0 %v592
        %v719 = vpop.f32.mrf.mxu0
        %v720 = vadd.f32 %v692, %v719
        %721 = vmatmul.f32.gmra.mxu0 %v594
        %v722 = vpop.f32.mrf.mxu0
        %v723 = vadd.f32 %v692, %v722
        %724 = vmatmul.f32.gmra.mxu0 %v596
        %v725 = vpop.f32.mrf.mxu0
        %v726 = vadd.f32 %v692, %v725
        %727 = vmatmul.f32.gmra.mxu0 %v598
        %v728 = vpop.f32.mrf.mxu0
        %v729 = vadd.f32 %v692, %v728
        %730 = vmatmul.f32.gmra.mxu0 %v600
        %v731 = vpop.f32.mrf.mxu0
        %v732 = vadd.f32 %v692, %v731
        %733 = vmatmul.f32.gmra.mxu0 %v602
        %v734 = vpop.f32.mrf.mxu0
        %v735 = vadd.f32 %v692, %v734
        %736 = vmatmul.f32.gmra.mxu0 %v604
        %v737 = vpop.f32.mrf.mxu0
        %v738 = vadd.f32 %v692, %v737
        %739 = vmatmul.f32.gmra.mxu0 %v606
        %v740 = vpop.f32.mrf.mxu0
        %v741 = vadd.f32 %v692, %v740
        %742 = vmatmul.f32.gmra.mxu0 %v608
        %v743 = vpop.f32.mrf.mxu0
        %v744 = vadd.f32 %v692, %v743
        %745 = vmatmul.f32.gmra.mxu0 %v610
        %v746 = vpop.f32.mrf.mxu0
        %v747 = vadd.f32 %v692, %v746
        %748 = vmatmul.f32.gmra.mxu0 %v612
        %v749 = vpop.f32.mrf.mxu0
        %v750 = vadd.f32 %v692, %v749
        %751 = vmatmul.f32.gmra.mxu0 %v614
        %v752 = vpop.f32.mrf.mxu0
        %v753 = vadd.f32 %v692, %v752
        %754 = vmatmul.f32.gmra.mxu0 %v616
        %v755 = vpop.f32.mrf.mxu0
        %v756 = vadd.f32 %v692, %v755
        %757 = vmatmul.f32.gmra.mxu0 %v618
        %v758 = vpop.f32.mrf.mxu0
        %v759 = vadd.f32 %v692, %v758
        %760 = vmatmul.f32.gmra.mxu0 %v620
        %v761 = vpop.f32.mrf.mxu0
        %v762 = vadd.f32 %v692, %v761
        %763 = vmatmul.f32.gmra.mxu0 %v622
        %v764 = vpop.f32.mrf.mxu0
        %v765 = vadd.f32 %v692, %v764
        %766 = vmatmul.f32.gmra.mxu0 %v624
        %v767 = vpop.f32.mrf.mxu0
        %v768 = vadd.f32 %v692, %v767
        %769 = vdwg.mxu0
        %770 = vmatpush.msra.mxu0 %v688
        %771 = vmatpush.msra.mxu0 %v686
        %772 = vmatpush.msra.mxu0 %v684
        %773 = vmatpush.msra.mxu0 %v682
        %774 = vmatpush.msra.mxu0 %v680
        %775 = vmatpush.msra.mxu0 %v678
        %776 = vmatpush.msra.mxu0 %v676
        %777 = vmatpush.msra.mxu0 %v674
        %778 = vmatpush.msra.mxu0 %v672
        %779 = vmatpush.msra.mxu0 %v670
        %780 = vmatpush.msra.mxu0 %v668
        %781 = vmatpush.msra.mxu0 %v666
        %782 = vmatpush.msra.mxu0 %v664
        %783 = vmatpush.msra.mxu0 %v662
        %784 = vmatpush.msra.mxu0 %v660
        %785 = vmatpush.msra.mxu0 %v658
        %786 = vmatmul.f32.gmra.mxu0 %v589
        %v787 = vpop.f32.mrf.mxu0
        %v788 = vadd.f32 %v714, %v787
        %789 = vmatmul.f32.gmra.mxu0 %v591
        %v790 = vpop.f32.mrf.mxu0
        %v791 = vadd.f32 %v717, %v790
        %792 = vmatmul.f32.gmra.mxu0 %v593
        %v793 = vpop.f32.mrf.mxu0
        %v794 = vadd.f32 %v720, %v793
        %795 = vmatmul.f32.gmra.mxu0 %v595
        %v796 = vpop.f32.mrf.mxu0
        %v797 = vadd.f32 %v723, %v796
        %798 = vmatmul.f32.gmra.mxu0 %v597
        %v799 = vpop.f32.mrf.mxu0
        %v800 = vadd.f32 %v726, %v799
        %801 = vmatmul.f32.gmra.mxu0 %v599
        %v802 = vpop.f32.mrf.mxu0
        %v803 = vadd.f32 %v729, %v802
        %804 = vmatmul.f32.gmra.mxu0 %v601
        %v805 = vpop.f32.mrf.mxu0
        %v806 = vadd.f32 %v732, %v805
        %807 = vmatmul.f32.gmra.mxu0 %v603
        %v808 = vpop.f32.mrf.mxu0
        %v809 = vadd.f32 %v735, %v808
        %810 = vmatmul.f32.gmra.mxu0 %v605
        %v811 = vpop.f32.mrf.mxu0
        %v812 = vadd.f32 %v738, %v811
        %813 = vmatmul.f32.gmra.mxu0 %v607
        %v814 = vpop.f32.mrf.mxu0
        %v815 = vadd.f32 %v741, %v814
        %816 = vmatmul.f32.gmra.mxu0 %v609
        %v817 = vpop.f32.mrf.mxu0
        %v818 = vadd.f32 %v744, %v817
        %819 = vmatmul.f32.gmra.mxu0 %v611
        %v820 = vpop.f32.mrf.mxu0
        %v821 = vadd.f32 %v747, %v820
        %822 = vmatmul.f32.gmra.mxu0 %v613
        %v823 = vpop.f32.mrf.mxu0
        %v824 = vadd.f32 %v750, %v823
        %825 = vmatmul.f32.gmra.mxu0 %v615
        %v826 = vpop.f32.mrf.mxu0
        %v827 = vadd.f32 %v753, %v826
        %828 = vmatmul.f32.gmra.mxu0 %v617
        %v829 = vpop.f32.mrf.mxu0
        %v830 = vadd.f32 %v756, %v829
        %831 = vmatmul.f32.gmra.mxu0 %v619
        %v832 = vpop.f32.mrf.mxu0
        %v833 = vadd.f32 %v759, %v832
        %834 = vmatmul.f32.gmra.mxu0 %v621
        %v835 = vpop.f32.mrf.mxu0
        %v836 = vadd.f32 %v762, %v835
        %837 = vmatmul.f32.gmra.mxu0 %v623
        %v838 = vpop.f32.mrf.mxu0
        %v839 = vadd.f32 %v765, %v838
        %840 = vmatmul.f32.gmra.mxu0 %v625
        %v841 = vpop.f32.mrf.mxu0
        %v842 = vadd.f32 %v768, %v841
        %843 = vdwg.mxu0
        %844 = vmatpush.msra.mxu0 %v657
        %845 = vmatpush.msra.mxu0 %v655
        %846 = vmatpush.msra.mxu0 %v653
        %847 = vmatpush.msra.mxu0 %v651
        %848 = vmatpush.msra.mxu0 %v649
        %849 = vmatpush.msra.mxu0 %v647
        %850 = vmatpush.msra.mxu0 %v645
        %851 = vmatpush.msra.mxu0 %v643
        %852 = vmatpush.msra.mxu0 %v641
        %853 = vmatpush.msra.mxu0 %v639
        %854 = vmatpush.msra.mxu0 %v637
        %855 = vmatpush.msra.mxu0 %v635
        %856 = vmatpush.msra.mxu0 %v633
        %857 = vmatpush.msra.mxu0 %v631
        %858 = vmatpush.msra.mxu0 %v629
        %859 = vmatpush.msra.mxu0 %v627
        %860 = vmatmul.f32.gmra.mxu0 %v588
        %v861 = vpop.f32.mrf.mxu0
        %v862 = vadd.f32 %v693, %v861
        %863 = vmatmul.f32.gmra.mxu0 %v590
        %v864 = vpop.f32.mrf.mxu0
        %v865 = vadd.f32 %v693, %v864
        %866 = vmatmul.f32.gmra.mxu0 %v592
        %v867 = vpop.f32.mrf.mxu0
        %v868 = vadd.f32 %v693, %v867
        %869 = vmatmul.f32.gmra.mxu0 %v594
        %v870 = vpop.f32.mrf.mxu0
        %v871 = vadd.f32 %v693, %v870
        %872 = vmatmul.f32.gmra.mxu0 %v596
        %v873 = vpop.f32.mrf.mxu0
        %v874 = vadd.f32 %v693, %v873
        %875 = vmatmul.f32.gmra.mxu0 %v598
        %v876 = vpop.f32.mrf.mxu0
        %v877 = vadd.f32 %v693, %v876
        %878 = vmatmul.f32.gmra.mxu0 %v600
        %v879 = vpop.f32.mrf.mxu0
        %v880 = vadd.f32 %v693, %v879
        %881 = vmatmul.f32.gmra.mxu0 %v602
        %v882 = vpop.f32.mrf.mxu0
        %v883 = vadd.f32 %v693, %v882
        %884 = vmatmul.f32.gmra.mxu0 %v604
        %v885 = vpop.f32.mrf.mxu0
        %v886 = vadd.f32 %v693, %v885
        %887 = vmatmul.f32.gmra.mxu0 %v606
        %v888 = vpop.f32.mrf.mxu0
        %v889 = vadd.f32 %v693, %v888
        %890 = vmatmul.f32.gmra.mxu0 %v608
        %v891 = vpop.f32.mrf.mxu0
        %v892 = vadd.f32 %v693, %v891
        %893 = vmatmul.f32.gmra.mxu0 %v610
        %v894 = vpop.f32.mrf.mxu0
        %v895 = vadd.f32 %v693, %v894
        %896 = vmatmul.f32.gmra.mxu0 %v612
        %v897 = vpop.f32.mrf.mxu0
        %v898 = vadd.f32 %v693, %v897
        %899 = vmatmul.f32.gmra.mxu0 %v614
        %v900 = vpop.f32.mrf.mxu0
        %v901 = vadd.f32 %v693, %v900
        %902 = vmatmul.f32.gmra.mxu0 %v616
        %v903 = vpop.f32.mrf.mxu0
        %v904 = vadd.f32 %v693, %v903
        %905 = vmatmul.f32.gmra.mxu0 %v618
        %v906 = vpop.f32.mrf.mxu0
        %v907 = vadd.f32 %v693, %v906
        %908 = vmatmul.f32.gmra.mxu0 %v620
        %v909 = vpop.f32.mrf.mxu0
        %v910 = vadd.f32 %v693, %v909
        %911 = vmatmul.f32.gmra.mxu0 %v622
        %v912 = vpop.f32.mrf.mxu0
        %v913 = vadd.f32 %v693, %v912
        %914 = vmatmul.f32.gmra.mxu0 %v624
        %v915 = vpop.f32.mrf.mxu0
        %v916 = vadd.f32 %v693, %v915
        %917 = vdwg.mxu0
        %918 = vmatpush.msra.mxu0 %v689
        %919 = vmatpush.msra.mxu0 %v687
        %920 = vmatpush.msra.mxu0 %v685
        %921 = vmatpush.msra.mxu0 %v683
        %922 = vmatpush.msra.mxu0 %v681
        %923 = vmatpush.msra.mxu0 %v679
        %924 = vmatpush.msra.mxu0 %v677
        %925 = vmatpush.msra.mxu0 %v675
        %926 = vmatpush.msra.mxu0 %v673
        %927 = vmatpush.msra.mxu0 %v671
        %928 = vmatpush.msra.mxu0 %v669
        %929 = vmatpush.msra.mxu0 %v667
        %930 = vmatpush.msra.mxu0 %v665
        %931 = vmatpush.msra.mxu0 %v663
        %932 = vmatpush.msra.mxu0 %v661
        %933 = vmatpush.msra.mxu0 %v659
        %934 = vmatmul.f32.gmra.mxu0 %v589
        %v935 = vpop.f32.mrf.mxu0
        %v936 = vadd.f32 %v862, %v935
        %937 = vmatmul.f32.gmra.mxu0 %v591
        %v938 = vpop.f32.mrf.mxu0
        %v939 = vadd.f32 %v865, %v938
        %940 = vmatmul.f32.gmra.mxu0 %v593
        %v941 = vpop.f32.mrf.mxu0
        %v942 = vadd.f32 %v868, %v941
        %943 = vmatmul.f32.gmra.mxu0 %v595
        %v944 = vpop.f32.mrf.mxu0
        %v945 = vadd.f32 %v871, %v944
        %946 = vmatmul.f32.gmra.mxu0 %v597
        %v947 = vpop.f32.mrf.mxu0
        %v948 = vadd.f32 %v874, %v947
        %949 = vmatmul.f32.gmra.mxu0 %v599
        %v950 = vpop.f32.mrf.mxu0
        %v951 = vadd.f32 %v877, %v950
        %952 = vmatmul.f32.gmra.mxu0 %v601
        %v953 = vpop.f32.mrf.mxu0
        %v954 = vadd.f32 %v880, %v953
        %955 = vmatmul.f32.gmra.mxu0 %v603
        %v956 = vpop.f32.mrf.mxu0
        %v957 = vadd.f32 %v883, %v956
        %958 = vmatmul.f32.gmra.mxu0 %v605
        %v959 = vpop.f32.mrf.mxu0
        %v960 = vadd.f32 %v886, %v959
        %961 = vmatmul.f32.gmra.mxu0 %v607
        %v962 = vpop.f32.mrf.mxu0
        %v963 = vadd.f32 %v889, %v962
        %964 = vmatmul.f32.gmra.mxu0 %v609
        %v965 = vpop.f32.mrf.mxu0
        %v966 = vadd.f32 %v892, %v965
        %967 = vmatmul.f32.gmra.mxu0 %v611
        %v968 = vpop.f32.mrf.mxu0
        %v969 = vadd.f32 %v895, %v968
        %970 = vmatmul.f32.gmra.mxu0 %v613
        %v971 = vpop.f32.mrf.mxu0
        %v972 = vadd.f32 %v898, %v971
        %973 = vmatmul.f32.gmra.mxu0 %v615
        %v974 = vpop.f32.mrf.mxu0
        %v975 = vadd.f32 %v901, %v974
        %976 = vmatmul.f32.gmra.mxu0 %v617
        %v977 = vpop.f32.mrf.mxu0
        %v978 = vadd.f32 %v904, %v977
        %979 = vmatmul.f32.gmra.mxu0 %v619
        %v980 = vpop.f32.mrf.mxu0
        %v981 = vadd.f32 %v907, %v980
        %982 = vmatmul.f32.gmra.mxu0 %v621
        %v983 = vpop.f32.mrf.mxu0
        %v984 = vadd.f32 %v910, %v983
        %985 = vmatmul.f32.gmra.mxu0 %v623
        %v986 = vpop.f32.mrf.mxu0
        %v987 = vadd.f32 %v913, %v986
        %988 = vmatmul.f32.gmra.mxu0 %v625
        %v989 = vpop.f32.mrf.mxu0
        %v990 = vadd.f32 %v916, %v989
        %991 = vdwg.mxu0
        %v992 = vmax.f32 %v788, 0.0
        %v993 = vmax.f32 %v936, 0.0
        %v994 = vmax.f32 %v791, 0.0
        %v995 = vmax.f32 %v939, 0.0
        %v996 = vmax.f32 %v794, 0.0
        %v997 = vmax.f32 %v942, 0.0
        %v998 = vmax.f32 %v797, 0.0
        %v999 = vmax.f32 %v945, 0.0
        %v1000 = vmax.f32 %v800, 0.0
        %v1001 = vmax.f32 %v948, 0.0
        %v1002 = vmax.f32 %v803, 0.0
        %v1003 = vmax.f32 %v951, 0.0
        %v1004 = vmax.f32 %v806, 0.0
        %v1005 = vmax.f32 %v954, 0.0
        %v1006 = vmax.f32 %v809, 0.0
        %v1007 = vmax.f32 %v957, 0.0
        %v1008 = vmax.f32 %v812, 0.0
        %v1009 = vmax.f32 %v960, 0.0
        %v1010 = vmax.f32 %v815, 0.0
        %v1011 = vmax.f32 %v963, 0.0
        %v1012 = vmax.f32 %v818, 0.0
        %v1013 = vmax.f32 %v966, 0.0
        %v1014 = vmax.f32 %v821, 0.0
        %v1015 = vmax.f32 %v969, 0.0
        %v1016 = vmax.f32 %v824, 0.0
        %v1017 = vmax.f32 %v972, 0.0
        %v1018 = vmax.f32 %v827, 0.0
        %v1019 = vmax.f32 %v975, 0.0
        %v1020 = vmax.f32 %v830, 0.0
        %v1021 = vmax.f32 %v978, 0.0
        %v1022 = vmax.f32 %v833, 0.0
        %v1023 = vmax.f32 %v981, 0.0
        %v1024 = vmax.f32 %v836, 0.0
        %v1025 = vmax.f32 %v984, 0.0
        %v1026 = vmax.f32 %v839, 0.0
        %v1027 = vmax.f32 %v987, 0.0
        %v1028 = vmax.f32 %v842, 0.0
        %v1029 = vmax.f32 %v990, 0.0
        %v1030 = vld [vmem:[#allocation2] sm:$0xff]
        %v1031 = vld [vmem:[#allocation2 + $0x8] sm:$0xff]
        %v1032 = vld [vmem:[#allocation2 + $0x10] sm:$0xff]
        %v1033 = vld [vmem:[#allocation2 + $0x18] sm:$0xff]
        %v1034 = vld [vmem:[#allocation2 + $0x20] sm:$0xff]
        %v1035 = vld [vmem:[#allocation2 + $0x28] sm:$0xff]
        %v1036 = vld [vmem:[#allocation2 + $0x30] sm:$0xff]
        %v1037 = vld [vmem:[#allocation2 + $0x38] sm:$0xff]
        %v1038 = vld [vmem:[#allocation2 + $0x40] sm:$0xff]
        %v1039 = vld [vmem:[#allocation2 + $0x48] sm:$0xff]
        %v1040 = vld [vmem:[#allocation2 + $0x50] sm:$0xff]
        %v1041 = vld [vmem:[#allocation2 + $0x58] sm:$0xff]
        %v1042 = vld [vmem:[#allocation2 + $0x60] sm:$0xff]
        %v1043 = vld [vmem:[#allocation2 + $0x68] sm:$0xff]
        %v1044 = vld [vmem:[#allocation2 + $0x70] sm:$0xff]
        %v1045 = vld [vmem:[#allocation2 + $0x78] sm:$0xff]
        %v1046 = vld [vmem:[#allocation2 + $0x80] sm:$0xff]
        %v1047 = vld [vmem:[#allocation2 + $0x88] sm:$0xff]
        %v1048 = vld [vmem:[#allocation2 + $0x90] sm:$0xff]
        %v1049 = vld [vmem:[#allocation2 + $0x98] sm:$0xff]
        %v1050 = vld [vmem:[#allocation2 + $0xa0] sm:$0xff]
        %v1051 = vld [vmem:[#allocation2 + $0xa8] sm:$0xff]
        %v1052 = vld [vmem:[#allocation2 + $0xb0] sm:$0xff]
        %v1053 = vld [vmem:[#allocation2 + $0xb8] sm:$0xff]
        %v1054 = vld [vmem:[#allocation2 + $0xc0] sm:$0xff]
        %v1055 = vld [vmem:[#allocation2 + $0xc8] sm:$0xff]
        %v1056 = vld [vmem:[#allocation2 + $0xd0] sm:$0xff]
        %v1057 = vld [vmem:[#allocation2 + $0xd8] sm:$0xff]
        %v1058 = vld [vmem:[#allocation2 + $0xe0] sm:$0xff]
        %v1059 = vld [vmem:[#allocation2 + $0xe8] sm:$0xff]
        %v1060 = vld [vmem:[#allocation2 + $0xf0] sm:$0xff]
        %v1061 = vld [vmem:[#allocation2 + $0xf8] sm:$0xff]
        %v1062 = vld [vmem:[#allocation2 + $0x100] sm:$0xff]
        %v1063 = vld [vmem:[#allocation2 + $0x108] sm:$0xff]
        %v1064 = vld [vmem:[#allocation2 + $0x110] sm:$0xff]
        %v1065 = vld [vmem:[#allocation2 + $0x118] sm:$0xff]
        %v1066 = vld [vmem:[#allocation2 + $0x120] sm:$0xff]
        %v1067 = vld [vmem:[#allocation2 + $0x128] sm:$0xff]
        %v1068 = vld [vmem:[#allocation2 + $0x130] sm:$0xff]
        %v1069 = vld [vmem:[#allocation2 + $0x138] sm:$0xff]
        %v1070 = vld [vmem:[#allocation2 + $0x140] sm:$0xff]
        %v1071 = vld [vmem:[#allocation2 + $0x148] sm:$0xff]
        %v1072 = vld [vmem:[#allocation2 + $0x150] sm:$0xff]
        %v1073 = vld [vmem:[#allocation2 + $0x158] sm:$0xff]
        %v1074 = vld [vmem:[#allocation2 + $0x160] sm:$0xff]
        %v1075 = vld [vmem:[#allocation2 + $0x168] sm:$0xff]
        %v1076 = vld [vmem:[#allocation2 + $0x170] sm:$0xff]
        %v1077 = vld [vmem:[#allocation2 + $0x178] sm:$0xff]
        %v1078 = vld [vmem:[#allocation2 + $0x180] sm:$0xff]
        %v1079 = vld [vmem:[#allocation2 + $0x188] sm:$0xff]
        %v1080 = vld [vmem:[#allocation2 + $0x190] sm:$0xff]
        %v1081 = vld [vmem:[#allocation2 + $0x198] sm:$0xff]
        %v1082 = vld [vmem:[#allocation2 + $0x1a0] sm:$0xff]
        %v1083 = vld [vmem:[#allocation2 + $0x1a8] sm:$0xff]
        %v1084 = vld [vmem:[#allocation2 + $0x1b0] sm:$0xff]
        %v1085 = vld [vmem:[#allocation2 + $0x1b8] sm:$0xff]
        %v1086 = vld [vmem:[#allocation2 + $0x1c0] sm:$0xff]
        %v1087 = vld [vmem:[#allocation2 + $0x1c8] sm:$0xff]
        %v1088 = vld [vmem:[#allocation2 + $0x1d0] sm:$0xff]
        %v1089 = vld [vmem:[#allocation2 + $0x1d8] sm:$0xff]
        %v1090 = vld [vmem:[#allocation2 + $0x1e0] sm:$0xff]
        %v1091 = vld [vmem:[#allocation2 + $0x1e8] sm:$0xff]
        %v1092 = vld [vmem:[#allocation2 + $0x1f0] sm:$0xff]
        %v1093 = vld [vmem:[#allocation2 + $0x1f8] sm:$0xff]
        %v1094 = vld [vmem:[%s6] sm:$0x3]
        %v1096 = vperm.slane %v1094, 0
        %v1097 = vperm.slane %v1094, 1
        %1100 = vmatpush.msra.mxu0 %v1060
        %1101 = vmatpush.msra.mxu0 %v1058
        %1102 = vmatpush.msra.mxu0 %v1056
        %1103 = vmatpush.msra.mxu0 %v1054
        %1104 = vmatpush.msra.mxu0 %v1052
        %1105 = vmatpush.msra.mxu0 %v1050
        %1106 = vmatpush.msra.mxu0 %v1048
        %1107 = vmatpush.msra.mxu0 %v1046
        %1108 = vmatpush.msra.mxu0 %v1044
        %1109 = vmatpush.msra.mxu0 %v1042
        %1110 = vmatpush.msra.mxu0 %v1040
        %1111 = vmatpush.msra.mxu0 %v1038
        %1112 = vmatpush.msra.mxu0 %v1036
        %1113 = vmatpush.msra.mxu0 %v1034
        %1114 = vmatpush.msra.mxu0 %v1032
        %1115 = vmatpush.msra.mxu0 %v1030
        %1116 = vmatmul.f32.gmra.mxu0 %v992
        %v1117 = vpop.f32.mrf.mxu0
        %v1118 = vadd.f32 %v1096, %v1117
        %1119 = vmatmul.f32.gmra.mxu0 %v994
        %v1120 = vpop.f32.mrf.mxu0
        %v1121 = vadd.f32 %v1096, %v1120
        %1122 = vmatmul.f32.gmra.mxu0 %v996
        %v1123 = vpop.f32.mrf.mxu0
        %v1124 = vadd.f32 %v1096, %v1123
        %1125 = vmatmul.f32.gmra.mxu0 %v998
        %v1126 = vpop.f32.mrf.mxu0
        %v1127 = vadd.f32 %v1096, %v1126
        %1128 = vmatmul.f32.gmra.mxu0 %v1000
        %v1129 = vpop.f32.mrf.mxu0
        %v1130 = vadd.f32 %v1096, %v1129
        %1131 = vmatmul.f32.gmra.mxu0 %v1002
        %v1132 = vpop.f32.mrf.mxu0
        %v1133 = vadd.f32 %v1096, %v1132
        %1134 = vmatmul.f32.gmra.mxu0 %v1004
        %v1135 = vpop.f32.mrf.mxu0
        %v1136 = vadd.f32 %v1096, %v1135
        %1137 = vmatmul.f32.gmra.mxu0 %v1006
        %v1138 = vpop.f32.mrf.mxu0
        %v1139 = vadd.f32 %v1096, %v1138
        %1140 = vmatmul.f32.gmra.mxu0 %v1008
        %v1141 = vpop.f32.mrf.mxu0
        %v1142 = vadd.f32 %v1096, %v1141
        %1143 = vmatmul.f32.gmra.mxu0 %v1010
        %v1144 = vpop.f32.mrf.mxu0
        %v1145 = vadd.f32 %v1096, %v1144
        %1146 = vmatmul.f32.gmra.mxu0 %v1012
        %v1147 = vpop.f32.mrf.mxu0
        %v1148 = vadd.f32 %v1096, %v1147
        %1149 = vmatmul.f32.gmra.mxu0 %v1014
        %v1150 = vpop.f32.mrf.mxu0
        %v1151 = vadd.f32 %v1096, %v1150
        %1152 = vmatmul.f32.gmra.mxu0 %v1016
        %v1153 = vpop.f32.mrf.mxu0
        %v1154 = vadd.f32 %v1096, %v1153
        %1155 = vmatmul.f32.gmra.mxu0 %v1018
        %v1156 = vpop.f32.mrf.mxu0
        %v1157 = vadd.f32 %v1096, %v1156
        %1158 = vmatmul.f32.gmra.mxu0 %v1020
        %v1159 = vpop.f32.mrf.mxu0
        %v1160 = vadd.f32 %v1096, %v1159
        %1161 = vmatmul.f32.gmra.mxu0 %v1022
        %v1162 = vpop.f32.mrf.mxu0
        %v1163 = vadd.f32 %v1096, %v1162
        %1164 = vmatmul.f32.gmra.mxu0 %v1024
        %v1165 = vpop.f32.mrf.mxu0
        %v1166 = vadd.f32 %v1096, %v1165
        %1167 = vmatmul.f32.gmra.mxu0 %v1026
        %v1168 = vpop.f32.mrf.mxu0
        %v1169 = vadd.f32 %v1096, %v1168
        %1170 = vmatmul.f32.gmra.mxu0 %v1028
        %v1171 = vpop.f32.mrf.mxu0
        %v1172 = vadd.f32 %v1096, %v1171
        %1173 = vdwg.mxu0
        %1174 = vmatpush.msra.mxu0 %v1092
        %1175 = vmatpush.msra.mxu0 %v1090
        %1176 = vmatpush.msra.mxu0 %v1088
        %1177 = vmatpush.msra.mxu0 %v1086
        %1178 = vmatpush.msra.mxu0 %v1084
        %1179 = vmatpush.msra.mxu0 %v1082
        %1180 = vmatpush.msra.mxu0 %v1080
        %1181 = vmatpush.msra.mxu0 %v1078
        %1182 = vmatpush.msra.mxu0 %v1076
        %1183 = vmatpush.msra.mxu0 %v1074
        %1184 = vmatpush.msra.mxu0 %v1072
        %1185 = vmatpush.msra.mxu0 %v1070
        %1186 = vmatpush.msra.mxu0 %v1068
        %1187 = vmatpush.msra.mxu0 %v1066
        %1188 = vmatpush.msra.mxu0 %v1064
        %1189 = vmatpush.msra.mxu0 %v1062
        %1190 = vmatmul.f32.gmra.mxu0 %v993
        %v1191 = vpop.f32.mrf.mxu0
        %v1192 = vadd.f32 %v1118, %v1191
        %1193 = vmatmul.f32.gmra.mxu0 %v995
        %v1194 = vpop.f32.mrf.mxu0
        %v1195 = vadd.f32 %v1121, %v1194
        %1196 = vmatmul.f32.gmra.mxu0 %v997
        %v1197 = vpop.f32.mrf.mxu0
        %v1198 = vadd.f32 %v1124, %v1197
        %1199 = vmatmul.f32.gmra.mxu0 %v999
        %v1200 = vpop.f32.mrf.mxu0
        %v1201 = vadd.f32 %v1127, %v1200
        %1202 = vmatmul.f32.gmra.mxu0 %v1001
        %v1203 = vpop.f32.mrf.mxu0
        %v1204 = vadd.f32 %v1130, %v1203
        %1205 = vmatmul.f32.gmra.mxu0 %v1003
        %v1206 = vpop.f32.mrf.mxu0
        %v1207 = vadd.f32 %v1133, %v1206
        %1208 = vmatmul.f32.gmra.mxu0 %v1005
        %v1209 = vpop.f32.mrf.mxu0
        %v1210 = vadd.f32 %v1136, %v1209
        %1211 = vmatmul.f32.gmra.mxu0 %v1007
        %v1212 = vpop.f32.mrf.mxu0
        %v1213 = vadd.f32 %v1139, %v1212
        %1214 = vmatmul.f32.gmra.mxu0 %v1009
        %v1215 = vpop.f32.mrf.mxu0
        %v1216 = vadd.f32 %v1142, %v1215
        %1217 = vmatmul.f32.gmra.mxu0 %v1011
        %v1218 = vpop.f32.mrf.mxu0
        %v1219 = vadd.f32 %v1145, %v1218
        %1220 = vmatmul.f32.gmra.mxu0 %v1013
        %v1221 = vpop.f32.mrf.mxu0
        %v1222 = vadd.f32 %v1148, %v1221
        %1223 = vmatmul.f32.gmra.mxu0 %v1015
        %v1224 = vpop.f32.mrf.mxu0
        %v1225 = vadd.f32 %v1151, %v1224
        %1226 = vmatmul.f32.gmra.mxu0 %v1017
        %v1227 = vpop.f32.mrf.mxu0
        %v1228 = vadd.f32 %v1154, %v1227
        %1229 = vmatmul.f32.gmra.mxu0 %v1019
        %v1230 = vpop.f32.mrf.mxu0
        %v1231 = vadd.f32 %v1157, %v1230
        %1232 = vmatmul.f32.gmra.mxu0 %v1021
        %v1233 = vpop.f32.mrf.mxu0
        %v1234 = vadd.f32 %v1160, %v1233
        %1235 = vmatmul.f32.gmra.mxu0 %v1023
        %v1236 = vpop.f32.mrf.mxu0
        %v1237 = vadd.f32 %v1163, %v1236
        %1238 = vmatmul.f32.gmra.mxu0 %v1025
        %v1239 = vpop.f32.mrf.mxu0
        %v1240 = vadd.f32 %v1166, %v1239
        %1241 = vmatmul.f32.gmra.mxu0 %v1027
        %v1242 = vpop.f32.mrf.mxu0
        %v1243 = vadd.f32 %v1169, %v1242
        %1244 = vmatmul.f32.gmra.mxu0 %v1029
        %v1245 = vpop.f32.mrf.mxu0
        %v1246 = vadd.f32 %v1172, %v1245
        %1247 = vdwg.mxu0
        %1248 = vmatpush.msra.mxu0 %v1061
        %1249 = vmatpush.msra.mxu0 %v1059
        %1250 = vmatpush.msra.mxu0 %v1057
        %1251 = vmatpush.msra.mxu0 %v1055
        %1252 = vmatpush.msra.mxu0 %v1053
        %1253 = vmatpush.msra.mxu0 %v1051
        %1254 = vmatpush.msra.mxu0 %v1049
        %1255 = vmatpush.msra.mxu0 %v1047
        %1256 = vmatpush.msra.mxu0 %v1045
        %1257 = vmatpush.msra.mxu0 %v1043
        %1258 = vmatpush.msra.mxu0 %v1041
        %1259 = vmatpush.msra.mxu0 %v1039
        %1260 = vmatpush.msra.mxu0 %v1037
        %1261 = vmatpush.msra.mxu0 %v1035
        %1262 = vmatpush.msra.mxu0 %v1033
        %1263 = vmatpush.msra.mxu0 %v1031
        %1264 = vmatmul.f32.gmra.mxu0 %v992
        %v1265 = vpop.f32.mrf.mxu0
        %v1266 = vadd.f32 %v1097, %v1265
        %1267 = vmatmul.f32.gmra.mxu0 %v994
        %v1268 = vpop.f32.mrf.mxu0
        %v1269 = vadd.f32 %v1097, %v1268
        %1270 = vmatmul.f32.gmra.mxu0 %v996
        %v1271 = vpop.f32.mrf.mxu0
        %v1272 = vadd.f32 %v1097, %v1271
        %1273 = vmatmul.f32.gmra.mxu0 %v998
        %v1274 = vpop.f32.mrf.mxu0
        %v1275 = vadd.f32 %v1097, %v1274
        %1276 = vmatmul.f32.gmra.mxu0 %v1000
        %v1277 = vpop.f32.mrf.mxu0
        %v1278 = vadd.f32 %v1097, %v1277
        %1279 = vmatmul.f32.gmra.mxu0 %v1002
        %v1280 = vpop.f32.mrf.mxu0
        %v1281 = vadd.f32 %v1097, %v1280
        %1282 = vmatmul.f32.gmra.mxu0 %v1004
        %v1283 = vpop.f32.mrf.mxu0
        %v1284 = vadd.f32 %v1097, %v1283
        %1285 = vmatmul.f32.gmra.mxu0 %v1006
        %v1286 = vpop.f32.mrf.mxu0
        %v1287 = vadd.f32 %v1097, %v1286
        %1288 = vmatmul.f32.gmra.mxu0 %v1008
        %v1289 = vpop.f32.mrf.mxu0
        %v1290 = vadd.f32 %v1097, %v1289
        %1291 = vmatmul.f32.gmra.mxu0 %v1010
        %v1292 = vpop.f32.mrf.mxu0
        %v1293 = vadd.f32 %v1097, %v1292
        %1294 = vmatmul.f32.gmra.mxu0 %v1012
        %v1295 = vpop.f32.mrf.mxu0
        %v1296 = vadd.f32 %v1097, %v1295
        %1297 = vmatmul.f32.gmra.mxu0 %v1014
        %v1298 = vpop.f32.mrf.mxu0
        %v1299 = vadd.f32 %v1097, %v1298
        %1300 = vmatmul.f32.gmra.mxu0 %v1016
        %v1301 = vpop.f32.mrf.mxu0
        %v1302 = vadd.f32 %v1097, %v1301
        %1303 = vmatmul.f32.gmra.mxu0 %v1018
        %v1304 = vpop.f32.mrf.mxu0
        %v1305 = vadd.f32 %v1097, %v1304
        %1306 = vmatmul.f32.gmra.mxu0 %v1020
        %v1307 = vpop.f32.mrf.mxu0
        %v1308 = vadd.f32 %v1097, %v1307
        %1309 = vmatmul.f32.gmra.mxu0 %v1022
        %v1310 = vpop.f32.mrf.mxu0
        %v1311 = vadd.f32 %v1097, %v1310
        %1312 = vmatmul.f32.gmra.mxu0 %v1024
        %v1313 = vpop.f32.mrf.mxu0
        %v1314 = vadd.f32 %v1097, %v1313
        %1315 = vmatmul.f32.gmra.mxu0 %v1026
        %v1316 = vpop.f32.mrf.mxu0
        %v1317 = vadd.f32 %v1097, %v1316
        %1318 = vmatmul.f32.gmra.mxu0 %v1028
        %v1319 = vpop.f32.mrf.mxu0
        %v1320 = vadd.f32 %v1097, %v1319
        %1321 = vdwg.mxu0
        %1322 = vmatpush.msra.mxu0 %v1093
        %1323 = vmatpush.msra.mxu0 %v1091
        %1324 = vmatpush.msra.mxu0 %v1089
        %1325 = vmatpush.msra.mxu0 %v1087
        %1326 = vmatpush.msra.mxu0 %v1085
        %1327 = vmatpush.msra.mxu0 %v1083
        %1328 = vmatpush.msra.mxu0 %v1081
        %1329 = vmatpush.msra.mxu0 %v1079
        %1330 = vmatpush.msra.mxu0 %v1077
        %1331 = vmatpush.msra.mxu0 %v1075
        %1332 = vmatpush.msra.mxu0 %v1073
        %1333 = vmatpush.msra.mxu0 %v1071
        %1334 = vmatpush.msra.mxu0 %v1069
        %1335 = vmatpush.msra.mxu0 %v1067
        %1336 = vmatpush.msra.mxu0 %v1065
        %1337 = vmatpush.msra.mxu0 %v1063
        %1338 = vmatmul.f32.gmra.mxu0 %v993
        %v1339 = vpop.f32.mrf.mxu0
        %v1340 = vadd.f32 %v1266, %v1339
        %1341 = vmatmul.f32.gmra.mxu0 %v995
        %v1342 = vpop.f32.mrf.mxu0
        %v1343 = vadd.f32 %v1269, %v1342
        %1344 = vmatmul.f32.gmra.mxu0 %v997
        %v1345 = vpop.f32.mrf.mxu0
        %v1346 = vadd.f32 %v1272, %v1345
        %1347 = vmatmul.f32.gmra.mxu0 %v999
        %v1348 = vpop.f32.mrf.mxu0
        %v1349 = vadd.f32 %v1275, %v1348
        %1350 = vmatmul.f32.gmra.mxu0 %v1001
        %v1351 = vpop.f32.mrf.mxu0
        %v1352 = vadd.f32 %v1278, %v1351
        %1353 = vmatmul.f32.gmra.mxu0 %v1003
        %v1354 = vpop.f32.mrf.mxu0
        %v1355 = vadd.f32 %v1281, %v1354
        %1356 = vmatmul.f32.gmra.mxu0 %v1005
        %v1357 = vpop.f32.mrf.mxu0
        %v1358 = vadd.f32 %v1284, %v1357
        %1359 = vmatmul.f32.gmra.mxu0 %v1007
        %v1360 = vpop.f32.mrf.mxu0
        %v1361 = vadd.f32 %v1287, %v1360
        %1362 = vmatmul.f32.gmra.mxu0 %v1009
        %v1363 = vpop.f32.mrf.mxu0
        %v1364 = vadd.f32 %v1290, %v1363
        %1365 = vmatmul.f32.gmra.mxu0 %v1011
        %v1366 = vpop.f32.mrf.mxu0
        %v1367 = vadd.f32 %v1293, %v1366
        %1368 = vmatmul.f32.gmra.mxu0 %v1013
        %v1369 = vpop.f32.mrf.mxu0
        %v1370 = vadd.f32 %v1296, %v1369
        %1371 = vmatmul.f32.gmra.mxu0 %v1015
        %v1372 = vpop.f32.mrf.mxu0
        %v1373 = vadd.f32 %v1299, %v1372
        %1374 = vmatmul.f32.gmra.mxu0 %v1017
        %v1375 = vpop.f32.mrf.mxu0
        %v1376 = vadd.f32 %v1302, %v1375
        %1377 = vmatmul.f32.gmra.mxu0 %v1019
        %v1378 = vpop.f32.mrf.mxu0
        %v1379 = vadd.f32 %v1305, %v1378
        %1380 = vmatmul.f32.gmra.mxu0 %v1021
        %v1381 = vpop.f32.mrf.mxu0
        %v1382 = vadd.f32 %v1308, %v1381
        %1383 = vmatmul.f32.gmra.mxu0 %v1023
        %v1384 = vpop.f32.mrf.mxu0
        %v1385 = vadd.f32 %v1311, %v1384
        %1386 = vmatmul.f32.gmra.mxu0 %v1025
        %v1387 = vpop.f32.mrf.mxu0
        %v1388 = vadd.f32 %v1314, %v1387
        %1389 = vmatmul.f32.gmra.mxu0 %v1027
        %v1390 = vpop.f32.mrf.mxu0
        %v1391 = vadd.f32 %v1317, %v1390
        %1392 = vmatmul.f32.gmra.mxu0 %v1029
        %v1393 = vpop.f32.mrf.mxu0
        %v1394 = vadd.f32 %v1320, %v1393
        %1395 = vdwg.mxu0
        %v1396 = vmax.f32 %v1192, 0.0
        %v1397 = vmax.f32 %v1340, 0.0
        %v1398 = vmax.f32 %v1195, 0.0
        %v1399 = vmax.f32 %v1343, 0.0
        %v1400 = vmax.f32 %v1198, 0.0
        %v1401 = vmax.f32 %v1346, 0.0
        %v1402 = vmax.f32 %v1201, 0.0
        %v1403 = vmax.f32 %v1349, 0.0
        %v1404 = vmax.f32 %v1204, 0.0
        %v1405 = vmax.f32 %v1352, 0.0
        %v1406 = vmax.f32 %v1207, 0.0
        %v1407 = vmax.f32 %v1355, 0.0
        %v1408 = vmax.f32 %v1210, 0.0
        %v1409 = vmax.f32 %v1358, 0.0
        %v1410 = vmax.f32 %v1213, 0.0
        %v1411 = vmax.f32 %v1361, 0.0
        %v1412 = vmax.f32 %v1216, 0.0
        %v1413 = vmax.f32 %v1364, 0.0
        %v1414 = vmax.f32 %v1219, 0.0
        %v1415 = vmax.f32 %v1367, 0.0
        %v1416 = vmax.f32 %v1222, 0.0
        %v1417 = vmax.f32 %v1370, 0.0
        %v1418 = vmax.f32 %v1225, 0.0
        %v1419 = vmax.f32 %v1373, 0.0
        %v1420 = vmax.f32 %v1228, 0.0
        %v1421 = vmax.f32 %v1376, 0.0
        %v1422 = vmax.f32 %v1231, 0.0
        %v1423 = vmax.f32 %v1379, 0.0
        %v1424 = vmax.f32 %v1234, 0.0
        %v1425 = vmax.f32 %v1382, 0.0
        %v1426 = vmax.f32 %v1237, 0.0
        %v1427 = vmax.f32 %v1385, 0.0
        %v1428 = vmax.f32 %v1240, 0.0
        %v1429 = vmax.f32 %v1388, 0.0
        %v1430 = vmax.f32 %v1243, 0.0
        %v1431 = vmax.f32 %v1391, 0.0
        %v1432 = vmax.f32 %v1246, 0.0
        %v1433 = vmax.f32 %v1394, 0.0
        %v1434 = vld [vmem:[%s7] sm:$0xff]
        %v1435 = vld [vmem:[%s7 + $0x8] sm:$0xff]
        %v1436 = vld [vmem:[%s7 + $0x10] sm:$0xff]
        %v1437 = vld [vmem:[%s7 + $0x18] sm:$0xff]
        %v1438 = vld [vmem:[%s7 + $0x20] sm:$0xff]
        %v1439 = vld [vmem:[%s7 + $0x28] sm:$0xff]
        %v1440 = vld [vmem:[%s7 + $0x30] sm:$0xff]
        %v1441 = vld [vmem:[%s7 + $0x38] sm:$0xff]
        %v1442 = vld [vmem:[%s7 + $0x40] sm:$0xff]
        %v1443 = vld [vmem:[%s7 + $0x48] sm:$0xff]
        %v1444 = vld [vmem:[%s7 + $0x50] sm:$0xff]
        %v1445 = vld [vmem:[%s7 + $0x58] sm:$0xff]
        %v1446 = vld [vmem:[%s7 + $0x60] sm:$0xff]
        %v1447 = vld [vmem:[%s7 + $0x68] sm:$0xff]
        %v1448 = vld [vmem:[%s7 + $0x70] sm:$0xff]
        %v1449 = vld [vmem:[%s7 + $0x78] sm:$0xff]
        %v1450 = vld [vmem:[%s7 + $0x80] sm:$0xff]
        %v1451 = vld [vmem:[%s7 + $0x88] sm:$0xff]
        %v1452 = vld [vmem:[%s7 + $0x90] sm:$0xff]
        %v1453 = vld [vmem:[%s7 + $0x98] sm:$0xff]
        %v1454 = vld [vmem:[%s7 + $0xa0] sm:$0xff]
        %v1455 = vld [vmem:[%s7 + $0xa8] sm:$0xff]
        %v1456 = vld [vmem:[%s7 + $0xb0] sm:$0xff]
        %v1457 = vld [vmem:[%s7 + $0xb8] sm:$0xff]
        %v1458 = vld [vmem:[%s7 + $0xc0] sm:$0xff]
        %v1459 = vld [vmem:[%s7 + $0xc8] sm:$0xff]
        %v1460 = vld [vmem:[%s7 + $0xd0] sm:$0xff]
        %v1461 = vld [vmem:[%s7 + $0xd8] sm:$0xff]
        %v1462 = vld [vmem:[%s7 + $0xe0] sm:$0xff]
        %v1463 = vld [vmem:[%s7 + $0xe8] sm:$0xff]
        %v1464 = vld [vmem:[%s7 + $0xf0] sm:$0xff]
        %v1465 = vld [vmem:[%s7 + $0xf8] sm:$0xff]
        %v1466 = vld [vmem:[%s8] sm:$0x1]
        %v1468 = vperm.slane %v1466, 0
        %1470 = vmatpush.msra.mxu0 %v1449
        %1471 = vmatpush.msra.mxu0 %v1448
        %1472 = vmatpush.msra.mxu0 %v1447
        %1473 = vmatpush.msra.mxu0 %v1446
        %1474 = vmatpush.msra.mxu0 %v1445
        %1475 = vmatpush.msra.mxu0 %v1444
        %1476 = vmatpush.msra.mxu0 %v1443
        %1477 = vmatpush.msra.mxu0 %v1442
        %1478 = vmatpush.msra.mxu0 %v1441
        %1479 = vmatpush.msra.mxu0 %v1440
        %1480 = vmatpush.msra.mxu0 %v1439
        %1481 = vmatpush.msra.mxu0 %v1438
        %1482 = vmatpush.msra.mxu0 %v1437
        %1483 = vmatpush.msra.mxu0 %v1436
        %1484 = vmatpush.msra.mxu0 %v1435
        %1485 = vmatpush.msra.mxu0 %v1434
        %1486 = vmatmul.f32.gmra.mxu0 %v1396
        %v1487 = vpop.f32.mrf.mxu0
        %v1488 = vadd.f32 %v1468, %v1487
        %1489 = vmatmul.f32.gmra.mxu0 %v1398
        %v1490 = vpop.f32.mrf.mxu0
        %v1491 = vadd.f32 %v1468, %v1490
        %1492 = vmatmul.f32.gmra.mxu0 %v1400
        %v1493 = vpop.f32.mrf.mxu0
        %v1494 = vadd.f32 %v1468, %v1493
        %1495 = vmatmul.f32.gmra.mxu0 %v1402
        %v1496 = vpop.f32.mrf.mxu0
        %v1497 = vadd.f32 %v1468, %v1496
        %1498 = vmatmul.f32.gmra.mxu0 %v1404
        %v1499 = vpop.f32.mrf.mxu0
        %v1500 = vadd.f32 %v1468, %v1499
        %1501 = vmatmul.f32.gmra.mxu0 %v1406
        %v1502 = vpop.f32.mrf.mxu0
        %v1503 = vadd.f32 %v1468, %v1502
        %1504 = vmatmul.f32.gmra.mxu0 %v1408
        %v1505 = vpop.f32.mrf.mxu0
        %v1506 = vadd.f32 %v1468, %v1505
        %1507 = vmatmul.f32.gmra.mxu0 %v1410
        %v1508 = vpop.f32.mrf.mxu0
        %v1509 = vadd.f32 %v1468, %v1508
        %1510 = vmatmul.f32.gmra.mxu0 %v1412
        %v1511 = vpop.f32.mrf.mxu0
        %v1512 = vadd.f32 %v1468, %v1511
        %1513 = vmatmul.f32.gmra.mxu0 %v1414
        %v1514 = vpop.f32.mrf.mxu0
        %v1515 = vadd.f32 %v1468, %v1514
        %1516 = vmatmul.f32.gmra.mxu0 %v1416
        %v1517 = vpop.f32.mrf.mxu0
        %v1518 = vadd.f32 %v1468, %v1517
        %1519 = vmatmul.f32.gmra.mxu0 %v1418
        %v1520 = vpop.f32.mrf.mxu0
        %v1521 = vadd.f32 %v1468, %v1520
        %1522 = vmatmul.f32.gmra.mxu0 %v1420
        %v1523 = vpop.f32.mrf.mxu0
        %v1524 = vadd.f32 %v1468, %v1523
        %1525 = vmatmul.f32.gmra.mxu0 %v1422
        %v1526 = vpop.f32.mrf.mxu0
        %v1527 = vadd.f32 %v1468, %v1526
        %1528 = vmatmul.f32.gmra.mxu0 %v1424
        %v1529 = vpop.f32.mrf.mxu0
        %v1530 = vadd.f32 %v1468, %v1529
        %1531 = vmatmul.f32.gmra.mxu0 %v1426
        %v1532 = vpop.f32.mrf.mxu0
        %v1533 = vadd.f32 %v1468, %v1532
        %1534 = vmatmul.f32.gmra.mxu0 %v1428
        %v1535 = vpop.f32.mrf.mxu0
        %v1536 = vadd.f32 %v1468, %v1535
        %1537 = vmatmul.f32.gmra.mxu0 %v1430
        %v1538 = vpop.f32.mrf.mxu0
        %v1539 = vadd.f32 %v1468, %v1538
        %1540 = vmatmul.f32.gmra.mxu0 %v1432
        %v1541 = vpop.f32.mrf.mxu0
        %v1542 = vadd.f32 %v1468, %v1541
        %1543 = vdwg.mxu0
        %1544 = vmatpush.msra.mxu0 %v1465
        %1545 = vmatpush.msra.mxu0 %v1464
        %1546 = vmatpush.msra.mxu0 %v1463
        %1547 = vmatpush.msra.mxu0 %v1462
        %1548 = vmatpush.msra.mxu0 %v1461
        %1549 = vmatpush.msra.mxu0 %v1460
        %1550 = vmatpush.msra.mxu0 %v1459
        %1551 = vmatpush.msra.mxu0 %v1458
        %1552 = vmatpush.msra.mxu0 %v1457
        %1553 = vmatpush.msra.mxu0 %v1456
        %1554 = vmatpush.msra.mxu0 %v1455
        %1555 = vmatpush.msra.mxu0 %v1454
        %1556 = vmatpush.msra.mxu0 %v1453
        %1557 = vmatpush.msra.mxu0 %v1452
        %1558 = vmatpush.msra.mxu0 %v1451
        %1559 = vmatpush.msra.mxu0 %v1450
        %1560 = vmatmul.f32.gmra.mxu0 %v1397
        %v1561 = vpop.f32.mrf.mxu0
        %v1562 = vadd.f32 %v1488, %v1561
        %1563 = vmatmul.f32.gmra.mxu0 %v1399
        %v1564 = vpop.f32.mrf.mxu0
        %v1565 = vadd.f32 %v1491, %v1564
        %1566 = vmatmul.f32.gmra.mxu0 %v1401
        %v1567 = vpop.f32.mrf.mxu0
        %v1568 = vadd.f32 %v1494, %v1567
        %1569 = vmatmul.f32.gmra.mxu0 %v1403
        %v1570 = vpop.f32.mrf.mxu0
        %v1571 = vadd.f32 %v1497, %v1570
        %1572 = vmatmul.f32.gmra.mxu0 %v1405
        %v1573 = vpop.f32.mrf.mxu0
        %v1574 = vadd.f32 %v1500, %v1573
        %1575 = vmatmul.f32.gmra.mxu0 %v1407
        %v1576 = vpop.f32.mrf.mxu0
        %v1577 = vadd.f32 %v1503, %v1576
        %1578 = vmatmul.f32.gmra.mxu0 %v1409
        %v1579 = vpop.f32.mrf.mxu0
        %v1580 = vadd.f32 %v1506, %v1579
        %1581 = vmatmul.f32.gmra.mxu0 %v1411
        %v1582 = vpop.f32.mrf.mxu0
        %v1583 = vadd.f32 %v1509, %v1582
        %1584 = vmatmul.f32.gmra.mxu0 %v1413
        %v1585 = vpop.f32.mrf.mxu0
        %v1586 = vadd.f32 %v1512, %v1585
        %1587 = vmatmul.f32.gmra.mxu0 %v1415
        %v1588 = vpop.f32.mrf.mxu0
        %v1589 = vadd.f32 %v1515, %v1588
        %1590 = vmatmul.f32.gmra.mxu0 %v1417
        %v1591 = vpop.f32.mrf.mxu0
        %v1592 = vadd.f32 %v1518, %v1591
        %1593 = vmatmul.f32.gmra.mxu0 %v1419
        %v1594 = vpop.f32.mrf.mxu0
        %v1595 = vadd.f32 %v1521, %v1594
        %1596 = vmatmul.f32.gmra.mxu0 %v1421
        %v1597 = vpop.f32.mrf.mxu0
        %v1598 = vadd.f32 %v1524, %v1597
        %1599 = vmatmul.f32.gmra.mxu0 %v1423
        %v1600 = vpop.f32.mrf.mxu0
        %v1601 = vadd.f32 %v1527, %v1600
        %1602 = vmatmul.f32.gmra.mxu0 %v1425
        %v1603 = vpop.f32.mrf.mxu0
        %v1604 = vadd.f32 %v1530, %v1603
        %1605 = vmatmul.f32.gmra.mxu0 %v1427
        %v1606 = vpop.f32.mrf.mxu0
        %v1607 = vadd.f32 %v1533, %v1606
        %1608 = vmatmul.f32.gmra.mxu0 %v1429
        %v1609 = vpop.f32.mrf.mxu0
        %v1610 = vadd.f32 %v1536, %v1609
        %1611 = vmatmul.f32.gmra.mxu0 %v1431
        %v1612 = vpop.f32.mrf.mxu0
        %v1613 = vadd.f32 %v1539, %v1612
        %1614 = vmatmul.f32.gmra.mxu0 %v1433
        %v1615 = vpop.f32.mrf.mxu0
        %v1616 = vadd.f32 %v1542, %v1615
        %1617 = vdwg.mxu0
        %vm1618 = vcmask 23552
        %1619 = vst.msk [vmem:[%s351] sm:$0xff] %vm1618, %v1562
        %1620 = vst.msk [vmem:[%s351 + $0x8] sm:$0xff] %vm1618, %v1565
        %1621 = vst.msk [vmem:[%s351 + $0x10] sm:$0xff] %vm1618, %v1568
        %1622 = vst.msk [vmem:[%s351 + $0x18] sm:$0xff] %vm1618, %v1571
        %1623 = vst.msk [vmem:[%s351 + $0x20] sm:$0xff] %vm1618, %v1574
        %1624 = vst.msk [vmem:[%s351 + $0x28] sm:$0xff] %vm1618, %v1577
        %1625 = vst.msk [vmem:[%s351 + $0x30] sm:$0xff] %vm1618, %v1580
        %1626 = vst.msk [vmem:[%s351 + $0x38] sm:$0xff] %vm1618, %v1583
        %1627 = vst.msk [vmem:[%s351 + $0x40] sm:$0xff] %vm1618, %v1586
        %1628 = vst.msk [vmem:[%s351 + $0x48] sm:$0xff] %vm1618, %v1589
        %1629 = vst.msk [vmem:[%s351 + $0x50] sm:$0xff] %vm1618, %v1592
        %1630 = vst.msk [vmem:[%s351 + $0x58] sm:$0xff] %vm1618, %v1595
        %1631 = vst.msk [vmem:[%s351 + $0x60] sm:$0xff] %vm1618, %v1598
        %1632 = vst.msk [vmem:[%s351 + $0x68] sm:$0xff] %vm1618, %v1601
        %1633 = vst.msk [vmem:[%s351 + $0x70] sm:$0xff] %vm1618, %v1604
        %1634 = vst.msk [vmem:[%s351 + $0x78] sm:$0xff] %vm1618, %v1607
        %1635 = vst.msk [vmem:[%s351 + $0x80] sm:$0xff] %vm1618, %v1610
        %1636 = vst.msk [vmem:[%s351 + $0x88] sm:$0xff] %vm1618, %v1613
        %1637 = vst.msk [vmem:[%s351 + $0x90] sm:$0xff] %vm1618, %v1616
        %s1638 = smul.u32 19, %s21
        %p1639 = scmp.lt.s32.totalorder %s1638, 37
        %s1640 = scalar_select %p1639, %s1638, 37
        %s1641 = smul.addr %s1640, 8
        %s1642 = scalar_lea.vmem %s9, %s1641
        // Predicated region
        $region61: #{tpu_custom_call.1} parent=55 // pred_check
          %p1643 = pneg %p233
        $region62: #{tpu_custom_call.1} parent=55 // pred_check_branch
          %1645 = sbr.rel (%p1643) target = $region64
        $region63: #{tpu_custom_call.1} parent=55 // pred_region
          %s1646 = smul.u32 19, %s21
        $region64: #{tpu_custom_call.1} parent=55 // pred_fallthru
          _
      $region56: #{tpu_custom_call.1} parent=5 // pred_fallthru
        _
      %p1647 = scmp.le.s32.totalorder 2, %s16
      // Predicated region
      $region65: #{tpu_custom_call.1} parent=5 // pred_check
        %p1648 = pneg %p1647
      $region66: #{tpu_custom_call.1} parent=5 // pred_check_branch
        %1650 = sbr.rel (%p1648) target = $region68
      $region67: #{tpu_custom_call.1} parent=5 // pred_region
        %s1651 = ssub.s32 %s16, 2
        // Predicated region
        $region69: #{tpu_custom_call.1} parent=67 // pred_check
          %p1652 = pneg %p239
        $region70: #{tpu_custom_call.1} parent=67 // pred_check_branch
          %1654 = sbr.rel (%p1652) target = $region72
        $region71: #{tpu_custom_call.1} parent=67 // pred_region
          %s1655 = smul.u32 19, %s22
          %p1656 = scmp.lt.s32.totalorder %s1655, 37
          %s1657 = scalar_select %p1656, %s1655, 37
          %s1658 = smul.addr %s1657, 8
          %s1659 = scalar_lea.vmem %s9, %s1658
        $region72: #{tpu_custom_call.1} parent=67 // pred_fallthru
          _
      $region68: #{tpu_custom_call.1} parent=5 // pred_fallthru
        _
    $region6: #{tpu_custom_call.1} parent=1 // loop_footer
      %s20 = sadd.s32 1, %s16
    $region7: #{tpu_custom_call.1} parent=1 // loop_footer_branch
      %15 = sbr.rel target = $region3
    $region8: #{tpu_custom_call.1} parent=1 // loop_exit
      _
    %1660 = vsyncpa [#allocation3], 1
    %s1661 = scalar_lea.sflag [#allocation3], 1
    %1662 = vsyncpa %s1661, 1

</llo_original>
